<compile_context>
chip_gen: v7x
topology: tpu7x:2x2x1
jax: 0.10.0
libtpu: 0.0.40
codegen_flags: <defaults>
</compile_context>

<pallas_src>
import jax
import jax.numpy as jnp
from jax.experimental import pallas as pl
from jax.experimental.pallas import tpu as pltpu


# ---------------------------------------------------------------------------
# Kernels
# ---------------------------------------------------------------------------

def _butd_qa_resident_kernel(q_ref, v_ref, wq_ref, bq_ref, wv_ref, bv_ref,
                             w1_ref, b1_ref, w2_ref, b2_ref, out_ref):
    """Primary path: 1-D grid over batch tiles; every weight is VMEM-resident."""
    # q / v branches: weight-normed Linear + ReLU (f32 accumulate + epilogue).
    q_h = jnp.maximum(
        jnp.dot(q_ref[...], wq_ref[...], preferred_element_type=jnp.float32)
        + bq_ref[...], 0.0)
    v_h = jnp.maximum(
        jnp.dot(v_ref[...], wv_ref[...], preferred_element_type=jnp.float32)
        + bv_ref[...], 0.0)
    # Joint representation (elementwise gating, f32) -> bf16 operand for MXU.
    joint = (q_h * v_h).astype(w1_ref.dtype)
    # Classifier hidden layer: Linear -> ReLU (Dropout p=0.0 is identity).
    h1 = jnp.maximum(
        jnp.dot(joint, w1_ref[...], preferred_element_type=jnp.float32)
        + b1_ref[...], 0.0)
    # Final projection over the full (lane-padded) answer axis.
    logits = (jnp.dot(h1.astype(w2_ref.dtype), w2_ref[...],
                      preferred_element_type=jnp.float32)
              + b2_ref[...])
    out_ref[...] = logits.astype(out_ref.dtype)


def _butd_qa_tiled_kernel(q_ref, v_ref, wq_ref, bq_ref, wv_ref, bv_ref,
                          w1_ref, b1_ref, w2_ref, b2_ref, out_ref, h1_ref):
    """Fallback: 2-D grid (batch tiles, answer tiles) for very large num_ans.

    h1_ref is computed on the first answer tile and reused for the rest.
    This is ONLY correct because the answer axis (axis 1) is the innermost
    grid axis, iterated sequentially, and marked "arbitrary".  Do not reorder
    the grid or mark that axis "parallel".
    """
    j = pl.program_id(1)  # answer-tile index (innermost, "arbitrary")

    @pl.when(j == 0)
    def _():
        q_h = jnp.maximum(
            jnp.dot(q_ref[...], wq_ref[...], preferred_element_type=jnp.float32)
            + bq_ref[...], 0.0)
        v_h = jnp.maximum(
            jnp.dot(v_ref[...], wv_ref[...], preferred_element_type=jnp.float32)
            + bv_ref[...], 0.0)
        joint = (q_h * v_h).astype(w1_ref.dtype)
        h1 = jnp.maximum(
            jnp.dot(joint, w1_ref[...], preferred_element_type=jnp.float32)
            + b1_ref[...], 0.0)
        h1_ref[...] = h1.astype(h1_ref.dtype)

    logits = (jnp.dot(h1_ref[...], w2_ref[...],
                      preferred_element_type=jnp.float32)
              + b2_ref[...])
    out_ref[...] = logits.astype(out_ref.dtype)


# ---------------------------------------------------------------------------
# Helpers
# ---------------------------------------------------------------------------

def _round_up(x, m):
    return ((x + m - 1) // m) * m


def _pad_axis(x, axis, new_size):
    if x.shape[axis] == new_size:
        return x
    pads = [(0, 0)] * x.ndim
    pads[axis] = (0, new_size - x.shape[axis])
    return jnp.pad(x, pads)


def _vmem_limit_bytes():
    """Scoped VMEM limit: ~85% of the chip's physical per-core VMEM.

    v5e/v6e have 128 MiB, v7x only 64 MiB — never hard-code 64 MiB (that is
    the whole physical VMEM on v7x, leaving no headroom for compiler scratch
    and semaphores).
    """
    try:
        cap = int(pltpu.get_tpu_info().vmem_capacity_bytes)
    except Exception:
        cap = 64 * 1024 * 1024          # conservative: smallest known (v7x)
    return int(cap * 0.85)


def _choose_tile_b(batch):
    """Batch tile: multiple of 8 (sublanes), minimal padding waste, and >= 2
    tiles whenever the batch allows it so the "parallel" batch axis gives both
    TensorCores work under v7x megacore sharding (harmless on v5e/v6e)."""
    b8 = _round_up(batch, 8)
    if b8 <= 16:
        return b8                               # too small to split
    if b8 <= 1024:
        return _round_up((b8 + 1) // 2, 8)      # exactly two tiles
    best_tile, best_waste = None, None
    for t in (256, 384, 512, 768):              # >= roofline floor, MXU-friendly
        waste = _round_up(b8, t) - b8
        if (best_waste is None or waste < best_waste
                or (waste == best_waste and t > best_tile)):
            best_tile, best_waste = t, waste
    return best_tile


def _first_that_runs(*thunks):
    """Run thunks in order, return the first result that compiles+executes."""
    err = None
    for t in thunks:
        try:
            return t()
        except Exception as e:      # robustness fallback (e.g. pipeline_mode)
            err = e
    raise err


# ---------------------------------------------------------------------------
# One-time parameter preparation (hoisted out of the per-call path)
# ---------------------------------------------------------------------------

def prepare_params(params):
    """bf16-cast matmul operands, f32 biases, lane-dense (128) padding of the
    classifier weights along the answer axis.  Call once, reuse per forward."""
    wq_t, bq, wv_t, bv, w1_t, b1, w2_t, b2 = params
    num_ans = w2_t.shape[1]
    n_pad = _round_up(num_ans, 128)
    return dict(
        wq=wq_t.astype(jnp.bfloat16),
        bq=bq.reshape(1, -1).astype(jnp.float32),
        wv=wv_t.astype(jnp.bfloat16),
        bv=bv.reshape(1, -1).astype(jnp.float32),
        w1=w1_t.astype(jnp.bfloat16),
        b1=b1.reshape(1, -1).astype(jnp.float32),
        w2=_pad_axis(w2_t.astype(jnp.bfloat16), 1, n_pad),
        b2=_pad_axis(b2.reshape(1, -1).astype(jnp.float32), 1, n_pad),
        num_ans=num_ans,
    )


# ---------------------------------------------------------------------------
# Forward wrapper
# ---------------------------------------------------------------------------

def butd_qa_head(video_embed, question_embed, prepped):
    """video_embed: [B, v_dim], question_embed: [B, q_dim] -> bf16 logits [B, num_ans]."""
    wq, bq, wv, bv, w1, b1, w2, b2 = (
        prepped[k] for k in ("wq", "bq", "wv", "bv", "w1", "b1", "w2", "b2"))
    num_ans = prepped["num_ans"]
    B, q_dim = question_embed.shape
    v_dim = video_embed.shape[1]
    hid = wq.shape[1]
    hid2 = w1.shape[1]
    n_pad = w2.shape[1]                 # answer axis, multiple of 128

    q = question_embed.astype(jnp.bfloat16)
    v = video_embed.astype(jnp.bfloat16)

    vmem_limit = _vmem_limit_bytes()
    budget = int(vmem_limit * 0.9)

    def resident_vmem_bytes(tb):
        # Single-buffered bf16 weights + f32 biases, double-buffered bf16
        # activation and output tiles.
        weights = 2 * (q_dim * hid + v_dim * hid + hid * hid2 + hid2 * n_pad)
        biases = 4 * (2 * hid + hid2 + n_pad)
        acts = 2 * 2 * tb * (q_dim + v_dim)
        outs = 2 * 2 * tb * n_pad
        return weights + biases + acts + outs

    # Prefer the W2-resident layout (weights cross HBM exactly once); shrink
    # the batch tile if needed, else fall back to answer-tiled streaming.
    tile_b = _choose_tile_b(B)
    use_resident = False
    for tb in [tile_b] + [t for t in (512, 384, 256, 128, 64, 32, 16, 8)
                          if t < tile_b]:
        if resident_vmem_bytes(tb) <= budget:
            tile_b = tb
            use_resident = True
            break

    b_pad = _round_up(B, tile_b)
    q = _pad_axis(q, 0, b_pad)
    v = _pad_axis(v, 0, b_pad)
    grid_b = b_pad // tile_b

    def resident_call(single_buffer_weights):
        if single_buffer_weights:
            # Constant block index -> single-buffer the resident weights.
            def wspec(shape):
                return pl.BlockSpec(shape, lambda i: (0, 0),
                                    pipeline_mode=pl.Buffered(1))
        else:
            def wspec(shape):
                return pl.BlockSpec(shape, lambda i: (0, 0))
        in_specs = [
            # streamed activation tiles (pipelined over the batch axis)
            pl.BlockSpec((tile_b, q_dim), lambda i: (i, 0)),
            pl.BlockSpec((tile_b, v_dim), lambda i: (i, 0)),
            # VMEM-resident weights / biases (DMA'd once per call)
            wspec((q_dim, hid)), wspec((1, hid)),
            wspec((v_dim, hid)), wspec((1, hid)),
            wspec((hid, hid2)), wspec((1, hid2)),
            wspec((hid2, n_pad)), wspec((1, n_pad)),
        ]
        out_spec = pl.BlockSpec((tile_b, n_pad), lambda i: (i, 0))
        return pl.pallas_call(
            _butd_qa_resident_kernel,
            out_shape=jax.ShapeDtypeStruct((b_pad, n_pad), jnp.bfloat16),
            grid_spec=pltpu.PrefetchScalarGridSpec(
                num_scalar_prefetch=0,
                grid=(grid_b,),
                in_specs=in_specs,
                out_specs=out_spec,
            ),
            compiler_params=pltpu.CompilerParams(
                dimension_semantics=("parallel",),
                vmem_limit_bytes=vmem_limit,
            ),
        )(q, v, wq, bq, wv, bv, w1, b1, w2, b2)

    def tiled_call(single_buffer_weights, tile_n=1024):
        tile_n = min(tile_n, n_pad)
        n_pad2 = _round_up(num_ans, tile_n)
        w2p = _pad_axis(w2, 1, n_pad2)   # rare fallback only; already 128-padded
        b2p = _pad_axis(b2, 1, n_pad2)
        if single_buffer_weights:
            def wspec(shape):
                return pl.BlockSpec(shape, lambda i, j: (0, 0),
                                    pipeline_mode=pl.Buffered(1))
        else:
            def wspec(shape):
                return pl.BlockSpec(shape, lambda i, j: (0, 0))
        in_specs = [
            pl.BlockSpec((tile_b, q_dim), lambda i, j: (i, 0)),
            pl.BlockSpec((tile_b, v_dim), lambda i, j: (i, 0)),
            wspec((q_dim, hid)), wspec((1, hid)),
            wspec((v_dim, hid)), wspec((1, hid)),
            wspec((hid, hid2)), wspec((1, hid2)),
            # classifier output weights streamed along the answer axis
            pl.BlockSpec((hid2, tile_n), lambda i, j: (0, j)),
            pl.BlockSpec((1, tile_n), lambda i, j: (0, j)),
        ]
        out_spec = pl.BlockSpec((tile_b, tile_n), lambda i, j: (i, j))
        return pl.pallas_call(
            _butd_qa_tiled_kernel,
            out_shape=jax.ShapeDtypeStruct((b_pad, n_pad2), jnp.bfloat16),
            grid_spec=pltpu.PrefetchScalarGridSpec(
                num_scalar_prefetch=0,
                grid=(grid_b, n_pad2 // tile_n),
                in_specs=in_specs,
                out_specs=out_spec,
                scratch_shapes=[pltpu.VMEM((tile_b, hid2), jnp.bfloat16)],
            ),
            compiler_params=pltpu.CompilerParams(
                # Answer axis MUST stay innermost + "arbitrary": the h1
                # scratch computed at j == 0 is reused for all j > 0.
                dimension_semantics=("parallel", "arbitrary"),
                vmem_limit_bytes=vmem_limit,
            ),
        )(q, v, wq, bq, wv, bv, w1, b1, w2p, b2p)

    if use_resident:
        out = _first_that_runs(
            lambda: resident_call(True),    # single-buffered resident weights
            lambda: resident_call(False),   # if pipeline_mode is unsupported
            lambda: tiled_call(False),      # last-resort answer-tiled path
        )
    else:
        out = _first_that_runs(
            lambda: tiled_call(True),
            lambda: tiled_call(False),
        )

    # Slice off batch / answer padding. Output stays bf16; cast outside only
    # if the consumer needs f32.
    return out[:B, :num_ans]


# ---------------------------------------------------------------------------
# Synthetic parameters + pure-JAX reference
# ---------------------------------------------------------------------------

def init_params(key, v_dim, q_dim, hid_dim, num_ans):
    """Deterministic synthetic parameters matching the PyTorch module shapes."""
    ks = jax.random.split(key, 10)
    scale = 0.05

    def weight_norm_eff(k_v, k_g, out_dim, in_dim):
        # weight_norm(nn.Linear(in, out), dim=None): W_eff = g * V / ||V||_F
        v = jax.random.normal(k_v, (out_dim, in_dim), jnp.float32) * scale
        g = 1.0 + 0.1 * jax.random.normal(k_g, (), jnp.float32)
        return g * v / jnp.linalg.norm(v)

    wq = weight_norm_eff(ks[0], ks[1], hid_dim, q_dim)        # (hid, q_dim)
    bq = jax.random.normal(ks[2], (1, hid_dim), jnp.float32) * scale
    wv = weight_norm_eff(ks[3], ks[4], hid_dim, v_dim)        # (hid, v_dim)
    bv = jax.random.normal(ks[5], (1, hid_dim), jnp.float32) * scale
    w1 = jax.random.normal(ks[6], (2 * hid_dim, hid_dim), jnp.float32) * scale
    b1 = jax.random.normal(ks[7], (1, 2 * hid_dim), jnp.float32) * scale
    w2 = jax.random.normal(ks[8], (num_ans, 2 * hid_dim), jnp.float32) * scale
    b2 = jax.random.normal(ks[9], (1, num_ans), jnp.float32) * scale

    # Pre-transpose weights to [in_dim, out_dim] for in-kernel x @ W.
    return (wq.T, bq, wv.T, bv, w1.T, b1, w2.T, b2)


def reference_forward(video_embed, question_embed, params):
    """Pure-JAX f32 reference of the PyTorch forward (for sanity checking)."""
    wq_t, bq, wv_t, bv, w1_t, b1, w2_t, b2 = params
    q_h = jnp.maximum(question_embed @ wq_t + bq, 0.0)
    v_h = jnp.maximum(video_embed @ wv_t + bv, 0.0)
    joint = q_h * v_h
    h1 = jnp.maximum(joint @ w1_t + b1, 0.0)
    return h1 @ w2_t + b2


if __name__ == "__main__":
    # Small shapes consistent with the module: B=8, v_dim=48, q_dim=32,
    # hid_dim=32 (-> classifier hidden width 64), num_ans=16.
    B, v_dim, q_dim, hid_dim, num_ans = 8, 48, 32, 32, 16

    key = jax.random.PRNGKey(0)
    k_params, k_v, k_q = jax.random.split(key, 3)

    params = init_params(k_params, v_dim, q_dim, hid_dim, num_ans)
    prepped = prepare_params(params)      # one-time: bf16 cast + lane padding

    video_embed = jax.random.normal(k_v, (B, v_dim), jnp.float32)
    question_embed = jax.random.normal(k_q, (B, q_dim), jnp.float32)

    logits = butd_qa_head(video_embed, question_embed, prepped)
    logits = jax.block_until_ready(logits)

    ref = reference_forward(video_embed, question_embed, params)
    assert logits.shape == (B, num_ans)
    # bf16 matmul operands + bf16 logits vs f32 reference -> bf16-level tol.
    assert jnp.allclose(logits.astype(jnp.float32), ref, atol=2e-2, rtol=2e-2)

    print("KERNEL_OK")
</pallas_src>

<mosaic_0001>
module attributes {stable_mosaic.version = 11 : i64} {
  func.func @_butd_qa_resident_kernel(%arg0: i32, %arg1: memref<8x32xbf16, #tpu.memory_space<vmem>>, %arg2: memref<8x48xbf16, #tpu.memory_space<vmem>>, %arg3: memref<32x32xbf16, #tpu.memory_space<vmem>>, %arg4: memref<1x32xf32, #tpu.memory_space<vmem>>, %arg5: memref<48x32xbf16, #tpu.memory_space<vmem>>, %arg6: memref<1x32xf32, #tpu.memory_space<vmem>>, %arg7: memref<32x64xbf16, #tpu.memory_space<vmem>>, %arg8: memref<1x64xf32, #tpu.memory_space<vmem>>, %arg9: memref<64x128xbf16, #tpu.memory_space<vmem>>, %arg10: memref<1x128xf32, #tpu.memory_space<vmem>>, %arg11: memref<8x128xbf16, #tpu.memory_space<vmem>>) attributes {dimension_semantics = [#tpu.dimension_semantics<parallel>], iteration_bounds = array<i64: 1>, scalar_prefetch = 0 : i64, scratch_operands = 0 : i64, tpu.core_type = #tpu.core_type<tc>, window_params = [{transform_indices = @transform_0, window_bounds = array<i64: 8, 32>}, {transform_indices = @transform_1, window_bounds = array<i64: 8, 48>}, {pipeline_mode = #tpu.pipeline_mode<synchronous>, transform_indices = @transform_2, window_bounds = array<i64: 32, 32>}, {pipeline_mode = #tpu.pipeline_mode<synchronous>, transform_indices = @transform_3, window_bounds = array<i64: 1, 32>}, {pipeline_mode = #tpu.pipeline_mode<synchronous>, transform_indices = @transform_4, window_bounds = array<i64: 48, 32>}, {pipeline_mode = #tpu.pipeline_mode<synchronous>, transform_indices = @transform_5, window_bounds = array<i64: 1, 32>}, {pipeline_mode = #tpu.pipeline_mode<synchronous>, transform_indices = @transform_6, window_bounds = array<i64: 32, 64>}, {pipeline_mode = #tpu.pipeline_mode<synchronous>, transform_indices = @transform_7, window_bounds = array<i64: 1, 64>}, {pipeline_mode = #tpu.pipeline_mode<synchronous>, transform_indices = @transform_8, window_bounds = array<i64: 64, 128>}, {pipeline_mode = #tpu.pipeline_mode<synchronous>, transform_indices = @transform_9, window_bounds = array<i64: 1, 128>}, {transform_indices = @transform_10, window_bounds = array<i64: 8, 128>}]} {
    %c0 = arith.constant 0 : index
    %c0_0 = arith.constant 0 : index
    %0 = vector.load %arg1[%c0, %c0_0] : memref<8x32xbf16, #tpu.memory_space<vmem>>, vector<8x32xbf16>
    %c0_1 = arith.constant 0 : index
    %c0_2 = arith.constant 0 : index
    %1 = vector.load %arg3[%c0_1, %c0_2] : memref<32x32xbf16, #tpu.memory_space<vmem>>, vector<32x32xbf16>
    %cst = arith.constant dense<0.000000e+00> : vector<8x32xf32>
    %2 = tpu.matmul %0, %1, %cst {dimension_numbers = #tpu.dot_dimension_numbers<[1], [0], [0], [1], [0, 0, 1, 1], [], []>} : vector<8x32xbf16>, vector<32x32xbf16>, vector<8x32xf32> -> vector<8x32xf32>
    %c0_3 = arith.constant 0 : index
    %c0_4 = arith.constant 0 : index
    %3 = vector.load %arg4[%c0_3, %c0_4] : memref<1x32xf32, #tpu.memory_space<vmem>>, vector<1x32xf32>
    %4 = vector.broadcast %3 : vector<1x32xf32> to vector<8x32xf32>
    %5 = arith.addf %2, %4 : vector<8x32xf32>
    %cst_5 = arith.constant 0.000000e+00 : f32
    %6 = vector.broadcast %cst_5 : f32 to vector<8x32xf32>
    %7 = arith.maximumf %5, %6 : vector<8x32xf32>
    %c0_6 = arith.constant 0 : index
    %c0_7 = arith.constant 0 : index
    %8 = vector.load %arg2[%c0_6, %c0_7] : memref<8x48xbf16, #tpu.memory_space<vmem>>, vector<8x48xbf16>
    %c0_8 = arith.constant 0 : index
    %c0_9 = arith.constant 0 : index
    %9 = vector.load %arg5[%c0_8, %c0_9] : memref<48x32xbf16, #tpu.memory_space<vmem>>, vector<48x32xbf16>
    %cst_10 = arith.constant dense<0.000000e+00> : vector<8x32xf32>
    %10 = tpu.matmul %8, %9, %cst_10 {dimension_numbers = #tpu.dot_dimension_numbers<[1], [0], [0], [1], [0, 0, 1, 1], [], []>} : vector<8x48xbf16>, vector<48x32xbf16>, vector<8x32xf32> -> vector<8x32xf32>
    %c0_11 = arith.constant 0 : index
    %c0_12 = arith.constant 0 : index
    %11 = vector.load %arg6[%c0_11, %c0_12] : memref<1x32xf32, #tpu.memory_space<vmem>>, vector<1x32xf32>
    %12 = vector.broadcast %11 : vector<1x32xf32> to vector<8x32xf32>
    %13 = arith.addf %10, %12 : vector<8x32xf32>
    %cst_13 = arith.constant 0.000000e+00 : f32
    %14 = vector.broadcast %cst_13 : f32 to vector<8x32xf32>
    %15 = arith.maximumf %13, %14 : vector<8x32xf32>
    %16 = arith.mulf %7, %15 : vector<8x32xf32>
    %17 = arith.truncf %16 : vector<8x32xf32> to vector<8x32xbf16>
    %c0_14 = arith.constant 0 : index
    %c0_15 = arith.constant 0 : index
    %18 = vector.load %arg7[%c0_14, %c0_15] : memref<32x64xbf16, #tpu.memory_space<vmem>>, vector<32x64xbf16>
    %cst_16 = arith.constant dense<0.000000e+00> : vector<8x64xf32>
    %19 = tpu.matmul %17, %18, %cst_16 {dimension_numbers = #tpu.dot_dimension_numbers<[1], [0], [0], [1], [0, 0, 1, 1], [], []>} : vector<8x32xbf16>, vector<32x64xbf16>, vector<8x64xf32> -> vector<8x64xf32>
    %c0_17 = arith.constant 0 : index
    %c0_18 = arith.constant 0 : index
    %20 = vector.load %arg8[%c0_17, %c0_18] : memref<1x64xf32, #tpu.memory_space<vmem>>, vector<1x64xf32>
    %21 = vector.broadcast %20 : vector<1x64xf32> to vector<8x64xf32>
    %22 = arith.addf %19, %21 : vector<8x64xf32>
    %cst_19 = arith.constant 0.000000e+00 : f32
    %23 = vector.broadcast %cst_19 : f32 to vector<8x64xf32>
    %24 = arith.maximumf %22, %23 : vector<8x64xf32>
    %25 = arith.truncf %24 : vector<8x64xf32> to vector<8x64xbf16>
    %c0_20 = arith.constant 0 : index
    %c0_21 = arith.constant 0 : index
    %26 = vector.load %arg9[%c0_20, %c0_21] : memref<64x128xbf16, #tpu.memory_space<vmem>>, vector<64x128xbf16>
    %cst_22 = arith.constant dense<0.000000e+00> : vector<8x128xf32>
    %27 = tpu.matmul %25, %26, %cst_22 {dimension_numbers = #tpu.dot_dimension_numbers<[1], [0], [0], [1], [0, 0, 1, 1], [], []>} : vector<8x64xbf16>, vector<64x128xbf16>, vector<8x128xf32> -> vector<8x128xf32>
    %c0_23 = arith.constant 0 : index
    %c0_24 = arith.constant 0 : index
    %28 = vector.load %arg10[%c0_23, %c0_24] : memref<1x128xf32, #tpu.memory_space<vmem>>, vector<1x128xf32>
    %29 = vector.broadcast %28 : vector<1x128xf32> to vector<8x128xf32>
    %30 = arith.addf %27, %29 : vector<8x128xf32>
    %31 = arith.truncf %30 : vector<8x128xf32> to vector<8x128xbf16>
    %c0_25 = arith.constant 0 : index
    %c0_26 = arith.constant 0 : index
    %32 = vector.load %arg11[%c0_25, %c0_26] : memref<8x128xbf16, #tpu.memory_space<vmem>>, vector<8x128xbf16>
    tpu.vector_store %arg11[%c0_25, %c0_26], %31 {strides = array<i32>} : memref<8x128xbf16, #tpu.memory_space<vmem>>, vector<8x128xbf16>,
    return
  }
  func.func @transform_0(%arg0: i32) -> (i32, i32) {
    %c0_i32 = arith.constant 0 : i32
    %c0_i32_0 = arith.constant 0 : i32
    return %arg0, %c0_i32 : i32, i32
  }
  func.func @transform_1(%arg0: i32) -> (i32, i32) {
    %c0_i32 = arith.constant 0 : i32
    %c0_i32_0 = arith.constant 0 : i32
    return %arg0, %c0_i32 : i32, i32
  }
  func.func @transform_2(%arg0: i32) -> (i32, i32) {
    %c0_i32 = arith.constant 0 : i32
    %c0_i32_0 = arith.constant 0 : i32
    %c0_i32_1 = arith.constant 0 : i32
    return %c0_i32, %c0_i32_0 : i32, i32
  }
  func.func @transform_3(%arg0: i32) -> (i32, i32) {
    %c0_i32 = arith.constant 0 : i32
    %c0_i32_0 = arith.constant 0 : i32
    %c0_i32_1 = arith.constant 0 : i32
    return %c0_i32, %c0_i32_0 : i32, i32
  }
  func.func @transform_4(%arg0: i32) -> (i32, i32) {
    %c0_i32 = arith.constant 0 : i32
    %c0_i32_0 = arith.constant 0 : i32
    %c0_i32_1 = arith.constant 0 : i32
    return %c0_i32, %c0_i32_0 : i32, i32
  }
  func.func @transform_5(%arg0: i32) -> (i32, i32) {
    %c0_i32 = arith.constant 0 : i32
    %c0_i32_0 = arith.constant 0 : i32
    %c0_i32_1 = arith.constant 0 : i32
    return %c0_i32, %c0_i32_0 : i32, i32
  }
  func.func @transform_6(%arg0: i32) -> (i32, i32) {
    %c0_i32 = arith.constant 0 : i32
    %c0_i32_0 = arith.constant 0 : i32
    %c0_i32_1 = arith.constant 0 : i32
    return %c0_i32, %c0_i32_0 : i32, i32
  }
  func.func @transform_7(%arg0: i32) -> (i32, i32) {
    %c0_i32 = arith.constant 0 : i32
    %c0_i32_0 = arith.constant 0 : i32
    %c0_i32_1 = arith.constant 0 : i32
    return %c0_i32, %c0_i32_0 : i32, i32
  }
  func.func @transform_8(%arg0: i32) -> (i32, i32) {
    %c0_i32 = arith.constant 0 : i32
    %c0_i32_0 = arith.constant 0 : i32
    %c0_i32_1 = arith.constant 0 : i32
    return %c0_i32, %c0_i32_0 : i32, i32
  }
  func.func @transform_9(%arg0: i32) -> (i32, i32) {
    %c0_i32 = arith.constant 0 : i32
    %c0_i32_0 = arith.constant 0 : i32
    %c0_i32_1 = arith.constant 0 : i32
    return %c0_i32, %c0_i32_0 : i32, i32
  }
  func.func @transform_10(%arg0: i32) -> (i32, i32) {
    %c0_i32 = arith.constant 0 : i32
    %c0_i32_0 = arith.constant 0 : i32
    return %arg0, %c0_i32 : i32, i32
  }
}

module attributes {stable_mosaic.version = 11 : i64} {
  func.func @_butd_qa_resident_kernel(%arg0: i32, %arg1: memref<8x32xbf16, #tpu.memory_space<vmem>>, %arg2: memref<8x48xbf16, #tpu.memory_space<vmem>>, %arg3: memref<32x32xbf16, #tpu.memory_space<vmem>>, %arg4: memref<1x32xf32, #tpu.memory_space<vmem>>, %arg5: memref<48x32xbf16, #tpu.memory_space<vmem>>, %arg6: memref<1x32xf32, #tpu.memory_space<vmem>>, %arg7: memref<32x64xbf16, #tpu.memory_space<vmem>>, %arg8: memref<1x64xf32, #tpu.memory_space<vmem>>, %arg9: memref<64x128xbf16, #tpu.memory_space<vmem>>, %arg10: memref<1x128xf32, #tpu.memory_space<vmem>>, %arg11: memref<8x128xbf16, #tpu.memory_space<vmem>>) attributes {dimension_semantics = [#tpu.dimension_semantics<parallel>], iteration_bounds = array<i64: 1>, scalar_prefetch = 0 : i64, scratch_operands = 0 : i64, tpu.core_type = #tpu.core_type<tc>, window_params = [{transform_indices = @transform_0, window_bounds = array<i64: 8, 32>}, {transform_indices = @transform_1, window_bounds = array<i64: 8, 48>}, {pipeline_mode = #tpu.pipeline_mode<synchronous>, transform_indices = @transform_2, window_bounds = array<i64: 32, 32>}, {pipeline_mode = #tpu.pipeline_mode<synchronous>, transform_indices = @transform_3, window_bounds = array<i64: 1, 32>}, {pipeline_mode = #tpu.pipeline_mode<synchronous>, transform_indices = @transform_4, window_bounds = array<i64: 48, 32>}, {pipeline_mode = #tpu.pipeline_mode<synchronous>, transform_indices = @transform_5, window_bounds = array<i64: 1, 32>}, {pipeline_mode = #tpu.pipeline_mode<synchronous>, transform_indices = @transform_6, window_bounds = array<i64: 32, 64>}, {pipeline_mode = #tpu.pipeline_mode<synchronous>, transform_indices = @transform_7, window_bounds = array<i64: 1, 64>}, {pipeline_mode = #tpu.pipeline_mode<synchronous>, transform_indices = @transform_8, window_bounds = array<i64: 64, 128>}, {pipeline_mode = #tpu.pipeline_mode<synchronous>, transform_indices = @transform_9, window_bounds = array<i64: 1, 128>}, {transform_indices = @transform_10, window_bounds = array<i64: 8, 128>}]} {
    %c0 = arith.constant 0 : index
    %c0_0 = arith.constant 0 : index
    %0 = vector.load %arg1[%c0, %c0_0] : memref<8x32xbf16, #tpu.memory_space<vmem>>, vector<8x32xbf16>
    %c0_1 = arith.constant 0 : index
    %c0_2 = arith.constant 0 : index
    %1 = vector.load %arg3[%c0_1, %c0_2] : memref<32x32xbf16, #tpu.memory_space<vmem>>, vector<32x32xbf16>
    %cst = arith.constant dense<0.000000e+00> : vector<8x32xf32>
    %2 = tpu.matmul %0, %1, %cst {dimension_numbers = #tpu.dot_dimension_numbers<[1], [0], [0], [1], [0, 0, 1, 1], [], []>} : vector<8x32xbf16>, vector<32x32xbf16>, vector<8x32xf32> -> vector<8x32xf32>
    %c0_3 = arith.constant 0 : index
    %c0_4 = arith.constant 0 : index
    %3 = vector.load %arg4[%c0_3, %c0_4] : memref<1x32xf32, #tpu.memory_space<vmem>>, vector<1x32xf32>
    %4 = vector.broadcast %3 : vector<1x32xf32> to vector<8x32xf32>
    %5 = arith.addf %2, %4 : vector<8x32xf32>
    %cst_5 = arith.constant 0.000000e+00 : f32
    %6 = vector.broadcast %cst_5 : f32 to vector<8x32xf32>
    %7 = arith.maximumf %5, %6 : vector<8x32xf32>
    %c0_6 = arith.constant 0 : index
    %c0_7 = arith.constant 0 : index
    %8 = vector.load %arg2[%c0_6, %c0_7] : memref<8x48xbf16, #tpu.memory_space<vmem>>, vector<8x48xbf16>
    %c0_8 = arith.constant 0 : index
    %c0_9 = arith.constant 0 : index
    %9 = vector.load %arg5[%c0_8, %c0_9] : memref<48x32xbf16, #tpu.memory_space<vmem>>, vector<48x32xbf16>
    %cst_10 = arith.constant dense<0.000000e+00> : vector<8x32xf32>
    %10 = tpu.matmul %8, %9, %cst_10 {dimension_numbers = #tpu.dot_dimension_numbers<[1], [0], [0], [1], [0, 0, 1, 1], [], []>} : vector<8x48xbf16>, vector<48x32xbf16>, vector<8x32xf32> -> vector<8x32xf32>
    %c0_11 = arith.constant 0 : index
    %c0_12 = arith.constant 0 : index
    %11 = vector.load %arg6[%c0_11, %c0_12] : memref<1x32xf32, #tpu.memory_space<vmem>>, vector<1x32xf32>
    %12 = vector.broadcast %11 : vector<1x32xf32> to vector<8x32xf32>
    %13 = arith.addf %10, %12 : vector<8x32xf32>
    %cst_13 = arith.constant 0.000000e+00 : f32
    %14 = vector.broadcast %cst_13 : f32 to vector<8x32xf32>
    %15 = arith.maximumf %13, %14 : vector<8x32xf32>
    %16 = arith.mulf %7, %15 : vector<8x32xf32>
    %17 = arith.truncf %16 : vector<8x32xf32> to vector<8x32xbf16>
    %c0_14 = arith.constant 0 : index
    %c0_15 = arith.constant 0 : index
    %18 = vector.load %arg7[%c0_14, %c0_15] : memref<32x64xbf16, #tpu.memory_space<vmem>>, vector<32x64xbf16>
    %cst_16 = arith.constant dense<0.000000e+00> : vector<8x64xf32>
    %19 = tpu.matmul %17, %18, %cst_16 {dimension_numbers = #tpu.dot_dimension_numbers<[1], [0], [0], [1], [0, 0, 1, 1], [], []>} : vector<8x32xbf16>, vector<32x64xbf16>, vector<8x64xf32> -> vector<8x64xf32>
    %c0_17 = arith.constant 0 : index
    %c0_18 = arith.constant 0 : index
    %20 = vector.load %arg8[%c0_17, %c0_18] : memref<1x64xf32, #tpu.memory_space<vmem>>, vector<1x64xf32>
    %21 = vector.broadcast %20 : vector<1x64xf32> to vector<8x64xf32>
    %22 = arith.addf %19, %21 : vector<8x64xf32>
    %cst_19 = arith.constant 0.000000e+00 : f32
    %23 = vector.broadcast %cst_19 : f32 to vector<8x64xf32>
    %24 = arith.maximumf %22, %23 : vector<8x64xf32>
    %25 = arith.truncf %24 : vector<8x64xf32> to vector<8x64xbf16>
    %c0_20 = arith.constant 0 : index
    %c0_21 = arith.constant 0 : index
    %26 = vector.load %arg9[%c0_20, %c0_21] : memref<64x128xbf16, #tpu.memory_space<vmem>>, vector<64x128xbf16>
    %cst_22 = arith.constant dense<0.000000e+00> : vector<8x128xf32>
    %27 = tpu.matmul %25, %26, %cst_22 {dimension_numbers = #tpu.dot_dimension_numbers<[1], [0], [0], [1], [0, 0, 1, 1], [], []>} : vector<8x64xbf16>, vector<64x128xbf16>, vector<8x128xf32> -> vector<8x128xf32>
    %c0_23 = arith.constant 0 : index
    %c0_24 = arith.constant 0 : index
    %28 = vector.load %arg10[%c0_23, %c0_24] : memref<1x128xf32, #tpu.memory_space<vmem>>, vector<1x128xf32>
    %29 = vector.broadcast %28 : vector<1x128xf32> to vector<8x128xf32>
    %30 = arith.addf %27, %29 : vector<8x128xf32>
    %31 = arith.truncf %30 : vector<8x128xf32> to vector<8x128xbf16>
    %c0_25 = arith.constant 0 : index
    %c0_26 = arith.constant 0 : index
    %32 = vector.load %arg11[%c0_25, %c0_26] : memref<8x128xbf16, #tpu.memory_space<vmem>>, vector<8x128xbf16>
    tpu.vector_store %arg11[%c0_25, %c0_26], %31 {strides = array<i32>} : memref<8x128xbf16, #tpu.memory_space<vmem>>, vector<8x128xbf16>,
    return
  }
  func.func @transform_0(%arg0: i32) -> (i32, i32) {
    %c0_i32 = arith.constant 0 : i32
    %c0_i32_0 = arith.constant 0 : i32
    return %arg0, %c0_i32 : i32, i32
  }
  func.func @transform_1(%arg0: i32) -> (i32, i32) {
    %c0_i32 = arith.constant 0 : i32
    %c0_i32_0 = arith.constant 0 : i32
    return %arg0, %c0_i32 : i32, i32
  }
  func.func @transform_2(%arg0: i32) -> (i32, i32) {
    %c0_i32 = arith.constant 0 : i32
    %c0_i32_0 = arith.constant 0 : i32
    %c0_i32_1 = arith.constant 0 : i32
    return %c0_i32, %c0_i32_0 : i32, i32
  }
  func.func @transform_3(%arg0: i32) -> (i32, i32) {
    %c0_i32 = arith.constant 0 : i32
    %c0_i32_0 = arith.constant 0 : i32
    %c0_i32_1 = arith.constant 0 : i32
    return %c0_i32, %c0_i32_0 : i32, i32
  }
  func.func @transform_4(%arg0: i32) -> (i32, i32) {
    %c0_i32 = arith.constant 0 : i32
    %c0_i32_0 = arith.constant 0 : i32
    %c0_i32_1 = arith.constant 0 : i32
    return %c0_i32, %c0_i32_0 : i32, i32
  }
  func.func @transform_5(%arg0: i32) -> (i32, i32) {
    %c0_i32 = arith.constant 0 : i32
    %c0_i32_0 = arith.constant 0 : i32
    %c0_i32_1 = arith.constant 0 : i32
    return %c0_i32, %c0_i32_0 : i32, i32
  }
  func.func @transform_6(%arg0: i32) -> (i32, i32) {
    %c0_i32 = arith.constant 0 : i32
    %c0_i32_0 = arith.constant 0 : i32
    %c0_i32_1 = arith.constant 0 : i32
    return %c0_i32, %c0_i32_0 : i32, i32
  }
  func.func @transform_7(%arg0: i32) -> (i32, i32) {
    %c0_i32 = arith.constant 0 : i32
    %c0_i32_0 = arith.constant 0 : i32
    %c0_i32_1 = arith.constant 0 : i32
    return %c0_i32, %c0_i32_0 : i32, i32
  }
  func.func @transform_8(%arg0: i32) -> (i32, i32) {
    %c0_i32 = arith.constant 0 : i32
    %c0_i32_0 = arith.constant 0 : i32
    %c0_i32_1 = arith.constant 0 : i32
    return %c0_i32, %c0_i32_0 : i32, i32
  }
  func.func @transform_9(%arg0: i32) -> (i32, i32) {
    %c0_i32 = arith.constant 0 : i32
    %c0_i32_0 = arith.constant 0 : i32
    %c0_i32_1 = arith.constant 0 : i32
    return %c0_i32, %c0_i32_0 : i32, i32
  }
  func.func @transform_10(%arg0: i32) -> (i32, i32) {
    %c0_i32 = arith.constant 0 : i32
    %c0_i32_0 = arith.constant 0 : i32
    return %arg0, %c0_i32 : i32, i32
  }
}

module attributes {stable_mosaic.version = 11 : i64} {
  func.func @_butd_qa_tiled_kernel(%arg0: i32, %arg1: i32, %arg2: memref<8x32xbf16, #tpu.memory_space<vmem>>, %arg3: memref<8x48xbf16, #tpu.memory_space<vmem>>, %arg4: memref<32x32xbf16, #tpu.memory_space<vmem>>, %arg5: memref<1x32xf32, #tpu.memory_space<vmem>>, %arg6: memref<48x32xbf16, #tpu.memory_space<vmem>>, %arg7: memref<1x32xf32, #tpu.memory_space<vmem>>, %arg8: memref<32x64xbf16, #tpu.memory_space<vmem>>, %arg9: memref<1x64xf32, #tpu.memory_space<vmem>>, %arg10: memref<64x128xbf16, #tpu.memory_space<vmem>>, %arg11: memref<1x128xf32, #tpu.memory_space<vmem>>, %arg12: memref<8x128xbf16, #tpu.memory_space<vmem>>, %arg13: memref<8x64xbf16, #tpu.memory_space<vmem>>) attributes {dimension_semantics = [#tpu.dimension_semantics<parallel>, #tpu.dimension_semantics<arbitrary>], iteration_bounds = array<i64: 1, 1>, scalar_prefetch = 0 : i64, scratch_operands = 1 : i64, tpu.core_type = #tpu.core_type<tc>, window_params = [{transform_indices = @transform_0, window_bounds = array<i64: 8, 32>}, {transform_indices = @transform_1, window_bounds = array<i64: 8, 48>}, {pipeline_mode = #tpu.pipeline_mode<synchronous>, transform_indices = @transform_2, window_bounds = array<i64: 32, 32>}, {pipeline_mode = #tpu.pipeline_mode<synchronous>, transform_indices = @transform_3, window_bounds = array<i64: 1, 32>}, {pipeline_mode = #tpu.pipeline_mode<synchronous>, transform_indices = @transform_4, window_bounds = array<i64: 48, 32>}, {pipeline_mode = #tpu.pipeline_mode<synchronous>, transform_indices = @transform_5, window_bounds = array<i64: 1, 32>}, {pipeline_mode = #tpu.pipeline_mode<synchronous>, transform_indices = @transform_6, window_bounds = array<i64: 32, 64>}, {pipeline_mode = #tpu.pipeline_mode<synchronous>, transform_indices = @transform_7, window_bounds = array<i64: 1, 64>}, {transform_indices = @transform_8, window_bounds = array<i64: 64, 128>}, {transform_indices = @transform_9, window_bounds = array<i64: 1, 128>}, {transform_indices = @transform_10, window_bounds = array<i64: 8, 128>}]} {
    %c0_i32 = arith.constant 0 : i32
    %0 = arith.cmpi eq, %arg1, %c0_i32 : i32
    %1 = arith.extui %0 : i1 to i32
    %c0_i32_0 = arith.constant 0 : i32
    %2 = arith.cmpi ne, %1, %c0_i32_0 : i32
    scf.if %2 {
      %c0_8 = arith.constant 0 : index
      %c0_9 = arith.constant 0 : index
      %11 = vector.load %arg2[%c0_8, %c0_9] : memref<8x32xbf16, #tpu.memory_space<vmem>>, vector<8x32xbf16>
      %c0_10 = arith.constant 0 : index
      %c0_11 = arith.constant 0 : index
      %12 = vector.load %arg4[%c0_10, %c0_11] : memref<32x32xbf16, #tpu.memory_space<vmem>>, vector<32x32xbf16>
      %cst_12 = arith.constant dense<0.000000e+00> : vector<8x32xf32>
      %13 = tpu.matmul %11, %12, %cst_12 {dimension_numbers = #tpu.dot_dimension_numbers<[1], [0], [0], [1], [0, 0, 1, 1], [], []>} : vector<8x32xbf16>, vector<32x32xbf16>, vector<8x32xf32> -> vector<8x32xf32>
      %c0_13 = arith.constant 0 : index
      %c0_14 = arith.constant 0 : index
      %14 = vector.load %arg5[%c0_13, %c0_14] : memref<1x32xf32, #tpu.memory_space<vmem>>, vector<1x32xf32>
      %15 = vector.broadcast %14 : vector<1x32xf32> to vector<8x32xf32>
      %16 = arith.addf %13, %15 : vector<8x32xf32>
      %cst_15 = arith.constant 0.000000e+00 : f32
      %17 = vector.broadcast %cst_15 : f32 to vector<8x32xf32>
      %18 = arith.maximumf %16, %17 : vector<8x32xf32>
      %c0_16 = arith.constant 0 : index
      %c0_17 = arith.constant 0 : index
      %19 = vector.load %arg3[%c0_16, %c0_17] : memref<8x48xbf16, #tpu.memory_space<vmem>>, vector<8x48xbf16>
      %c0_18 = arith.constant 0 : index
      %c0_19 = arith.constant 0 : index
      %20 = vector.load %arg6[%c0_18, %c0_19] : memref<48x32xbf16, #tpu.memory_space<vmem>>, vector<48x32xbf16>
      %cst_20 = arith.constant dense<0.000000e+00> : vector<8x32xf32>
      %21 = tpu.matmul %19, %20, %cst_20 {dimension_numbers = #tpu.dot_dimension_numbers<[1], [0], [0], [1], [0, 0, 1, 1], [], []>} : vector<8x48xbf16>, vector<48x32xbf16>, vector<8x32xf32> -> vector<8x32xf32>
      %c0_21 = arith.constant 0 : index
      %c0_22 = arith.constant 0 : index
      %22 = vector.load %arg7[%c0_21, %c0_22] : memref<1x32xf32, #tpu.memory_space<vmem>>, vector<1x32xf32>
      %23 = vector.broadcast %22 : vector<1x32xf32> to vector<8x32xf32>
      %24 = arith.addf %21, %23 : vector<8x32xf32>
      %cst_23 = arith.constant 0.000000e+00 : f32
      %25 = vector.broadcast %cst_23 : f32 to vector<8x32xf32>
      %26 = arith.maximumf %24, %25 : vector<8x32xf32>
      %27 = arith.mulf %18, %26 : vector<8x32xf32>
      %28 = arith.truncf %27 : vector<8x32xf32> to vector<8x32xbf16>
      %c0_24 = arith.constant 0 : index
      %c0_25 = arith.constant 0 : index
      %29 = vector.load %arg8[%c0_24, %c0_25] : memref<32x64xbf16, #tpu.memory_space<vmem>>, vector<32x64xbf16>
      %cst_26 = arith.constant dense<0.000000e+00> : vector<8x64xf32>
      %30 = tpu.matmul %28, %29, %cst_26 {dimension_numbers = #tpu.dot_dimension_numbers<[1], [0], [0], [1], [0, 0, 1, 1], [], []>} : vector<8x32xbf16>, vector<32x64xbf16>, vector<8x64xf32> -> vector<8x64xf32>
      %c0_27 = arith.constant 0 : index
      %c0_28 = arith.constant 0 : index
      %31 = vector.load %arg9[%c0_27, %c0_28] : memref<1x64xf32, #tpu.memory_space<vmem>>, vector<1x64xf32>
      %32 = vector.broadcast %31 : vector<1x64xf32> to vector<8x64xf32>
      %33 = arith.addf %30, %32 : vector<8x64xf32>
      %cst_29 = arith.constant 0.000000e+00 : f32
      %34 = vector.broadcast %cst_29 : f32 to vector<8x64xf32>
      %35 = arith.maximumf %33, %34 : vector<8x64xf32>
      %36 = arith.truncf %35 : vector<8x64xf32> to vector<8x64xbf16>
      %c0_30 = arith.constant 0 : index
      %c0_31 = arith.constant 0 : index
      %37 = vector.load %arg13[%c0_30, %c0_31] : memref<8x64xbf16, #tpu.memory_space<vmem>>, vector<8x64xbf16>
      tpu.vector_store %arg13[%c0_30, %c0_31], %36 {strides = array<i32>} : memref<8x64xbf16, #tpu.memory_space<vmem>>, vector<8x64xbf16>,
    } else {
    }
    %c0 = arith.constant 0 : index
    %c0_1 = arith.constant 0 : index
    %3 = vector.load %arg13[%c0, %c0_1] : memref<8x64xbf16, #tpu.memory_space<vmem>>, vector<8x64xbf16>
    %c0_2 = arith.constant 0 : index
    %c0_3 = arith.constant 0 : index
    %4 = vector.load %arg10[%c0_2, %c0_3] : memref<64x128xbf16, #tpu.memory_space<vmem>>, vector<64x128xbf16>
    %cst = arith.constant dense<0.000000e+00> : vector<8x128xf32>
    %5 = tpu.matmul %3, %4, %cst {dimension_numbers = #tpu.dot_dimension_numbers<[1], [0], [0], [1], [0, 0, 1, 1], [], []>} : vector<8x64xbf16>, vector<64x128xbf16>, vector<8x128xf32> -> vector<8x128xf32>
    %c0_4 = arith.constant 0 : index
    %c0_5 = arith.constant 0 : index
    %6 = vector.load %arg11[%c0_4, %c0_5] : memref<1x128xf32, #tpu.memory_space<vmem>>, vector<1x128xf32>
    %7 = vector.broadcast %6 : vector<1x128xf32> to vector<8x128xf32>
    %8 = arith.addf %5, %7 : vector<8x128xf32>
    %9 = arith.truncf %8 : vector<8x128xf32> to vector<8x128xbf16>
    %c0_6 = arith.constant 0 : index
    %c0_7 = arith.constant 0 : index
    %10 = vector.load %arg12[%c0_6, %c0_7] : memref<8x128xbf16, #tpu.memory_space<vmem>>, vector<8x128xbf16>
    tpu.vector_store %arg12[%c0_6, %c0_7], %9 {strides = array<i32>} : memref<8x128xbf16, #tpu.memory_space<vmem>>, vector<8x128xbf16>,
    return
  }
  func.func @transform_0(%arg0: i32, %arg1: i32) -> (i32, i32) {
    %c0_i32 = arith.constant 0 : i32
    %c0_i32_0 = arith.constant 0 : i32
    return %arg0, %c0_i32 : i32, i32
  }
  func.func @transform_1(%arg0: i32, %arg1: i32) -> (i32, i32) {
    %c0_i32 = arith.constant 0 : i32
    %c0_i32_0 = arith.constant 0 : i32
    return %arg0, %c0_i32 : i32, i32
  }
  func.func @transform_2(%arg0: i32, %arg1: i32) -> (i32, i32) {
    %c0_i32 = arith.constant 0 : i32
    %c0_i32_0 = arith.constant 0 : i32
    %c0_i32_1 = arith.constant 0 : i32
    return %c0_i32, %c0_i32_0 : i32, i32
  }
  func.func @transform_3(%arg0: i32, %arg1: i32) -> (i32, i32) {
    %c0_i32 = arith.constant 0 : i32
    %c0_i32_0 = arith.constant 0 : i32
    %c0_i32_1 = arith.constant 0 : i32
    return %c0_i32, %c0_i32_0 : i32, i32
  }
  func.func @transform_4(%arg0: i32, %arg1: i32) -> (i32, i32) {
    %c0_i32 = arith.constant 0 : i32
    %c0_i32_0 = arith.constant 0 : i32
    %c0_i32_1 = arith.constant 0 : i32
    return %c0_i32, %c0_i32_0 : i32, i32
  }
  func.func @transform_5(%arg0: i32, %arg1: i32) -> (i32, i32) {
    %c0_i32 = arith.constant 0 : i32
    %c0_i32_0 = arith.constant 0 : i32
    %c0_i32_1 = arith.constant 0 : i32
    return %c0_i32, %c0_i32_0 : i32, i32
  }
  func.func @transform_6(%arg0: i32, %arg1: i32) -> (i32, i32) {
    %c0_i32 = arith.constant 0 : i32
    %c0_i32_0 = arith.constant 0 : i32
    %c0_i32_1 = arith.constant 0 : i32
    return %c0_i32, %c0_i32_0 : i32, i32
  }
  func.func @transform_7(%arg0: i32, %arg1: i32) -> (i32, i32) {
    %c0_i32 = arith.constant 0 : i32
    %c0_i32_0 = arith.constant 0 : i32
    %c0_i32_1 = arith.constant 0 : i32
    return %c0_i32, %c0_i32_0 : i32, i32
  }
  func.func @transform_8(%arg0: i32, %arg1: i32) -> (i32, i32) {
    %c0_i32 = arith.constant 0 : i32
    %c0_i32_0 = arith.constant 0 : i32
    return %c0_i32, %arg1 : i32, i32
  }
  func.func @transform_9(%arg0: i32, %arg1: i32) -> (i32, i32) {
    %c0_i32 = arith.constant 0 : i32
    %c0_i32_0 = arith.constant 0 : i32
    return %c0_i32, %arg1 : i32, i32
  }
  func.func @transform_10(%arg0: i32, %arg1: i32) -> (i32, i32) {
    %c0_i32 = arith.constant 0 : i32
    return %arg0, %arg1 : i32, i32
  }
}

</mosaic_0001>

<llo_original>
// kernel: tpu_custom_call.1
$region0: #{tpu_custom_call.1}
  #allocation0 [shape = 'u32[]', space=smem, size = 0x4, offset = 0x4, fixed_abs, tag = 'smem constant byte address 0x4 - core index']
  #allocation1 [shape = 'u32[144,128]{1,0:T(1,128)}', space=vmem, size = 0x12000, scoped, tag = 'internal scratch']
  %s0 = inlined_call_operand.vmem [shape: bf16[8,32], index: 0, kind: input, shape index: {}]
  %s1 = inlined_call_operand.vmem [shape: bf16[8,48], index: 1, kind: input, shape index: {}]
  %s2 = inlined_call_operand.vmem [shape: bf16[32,32], index: 2, kind: input, shape index: {}]
  %s3 = inlined_call_operand.vmem [shape: f32[1,32], index: 3, kind: input, shape index: {}]
  %s4 = inlined_call_operand.vmem [shape: bf16[48,32], index: 4, kind: input, shape index: {}]
  %s5 = inlined_call_operand.vmem [shape: f32[1,32], index: 5, kind: input, shape index: {}]
  %s6 = inlined_call_operand.hbm [shape: bf16[32,64], index: 6, kind: input, shape index: {}]
  %s7 = inlined_call_operand.vmem [shape: f32[1,64], index: 7, kind: input, shape index: {}]
  %s8 = inlined_call_operand.vmem [shape: bf16[64,128], index: 8, kind: input, shape index: {}]
  %s9 = inlined_call_operand.vmem [shape: f32[1,128], index: 9, kind: input, shape index: {}]
  %s10 = inlined_call_operand.hbm [shape: bf16[8,128], index: 10, kind: output, shape index: {}]
  %s11 = sld [smem:[#allocation0]]
  $region54: #{tpu_custom_call.1} parent=0
    _
  %s13 = ssub.s32 1, %s11
  %s14 = scalar_select 0, %s13, %s11
  $region1: #{tpu_custom_call.1} parent=0
    #allocation2 [shape = 'u8[8192]{0}', space=vmem, size = 0x2000, scoped, tag = 'input window, operand 6, single buffered']
    #allocation3 [shape = 's32[1]{0}', space=sflag, size = 0x4, scoped, tag = 'scoped memory for tpu_custom_call.1']
    #allocation4 [shape = 's32[1]{0}', space=sflag, size = 0x4, scoped, tag = 'scoped memory for tpu_custom_call.1']
    #allocation5 [shape = 'u8[2048]{0}', space=vmem, size = 0x800, scoped, tag = 'output window, operand 0, single buffered']
    %15 = vsyncpa [#allocation3], 0
    %16 = vsyncpa [#allocation4], 0
    // Predicated region
    $region2: #{tpu_custom_call.1} parent=1 // pred_check
      _
    $region3: #{tpu_custom_call.1} parent=1 // pred_check_branch
      %18 = sbr.rel (0) target = $region5
    $region4: #{tpu_custom_call.1} parent=1 // pred_region
      _
    $region5: #{tpu_custom_call.1} parent=1 // pred_fallthru
      _
    // Predicated region
    $region6: #{tpu_custom_call.1} parent=1 // pred_check
      _
    $region7: #{tpu_custom_call.1} parent=1 // pred_check_branch
      %20 = sbr.rel (0) target = $region9
    $region8: #{tpu_custom_call.1} parent=1 // pred_region
      _
    $region9: #{tpu_custom_call.1} parent=1 // pred_fallthru
      _
    // Predicated region
    $region10: #{tpu_custom_call.1} parent=1 // pred_check
      _
    $region11: #{tpu_custom_call.1} parent=1 // pred_check_branch
      %22 = sbr.rel (0) target = $region13
    $region12: #{tpu_custom_call.1} parent=1 // pred_region
      _
    $region13: #{tpu_custom_call.1} parent=1 // pred_fallthru
      _
    // Predicated region
    $region14: #{tpu_custom_call.1} parent=1 // pred_check
      _
    $region15: #{tpu_custom_call.1} parent=1 // pred_check_branch
      %24 = sbr.rel (0) target = $region17
    $region16: #{tpu_custom_call.1} parent=1 // pred_region
      _
    $region17: #{tpu_custom_call.1} parent=1 // pred_fallthru
      _
    // Predicated region
    $region18: #{tpu_custom_call.1} parent=1 // pred_check
      _
    $region19: #{tpu_custom_call.1} parent=1 // pred_check_branch
      %26 = sbr.rel (0) target = $region21
    $region20: #{tpu_custom_call.1} parent=1 // pred_region
      _
    $region21: #{tpu_custom_call.1} parent=1 // pred_fallthru
      _
    // Predicated region
    $region22: #{tpu_custom_call.1} parent=1 // pred_check
      _
    $region23: #{tpu_custom_call.1} parent=1 // pred_check_branch
      %28 = sbr.rel (0) target = $region25
    $region24: #{tpu_custom_call.1} parent=1 // pred_region
      _
    $region25: #{tpu_custom_call.1} parent=1 // pred_fallthru
      _
    // Predicated region
    $region26: #{tpu_custom_call.1} parent=1 // pred_check
      _
    $region27: #{tpu_custom_call.1} parent=1 // pred_check_branch
      %30 = sbr.rel (0) target = $region29
    $region28: #{tpu_custom_call.1} parent=1 // pred_region
      %s32 = ssub.s32 256, 256
      %33 = vsyncadd [#allocation3], %s32
      %s34 = sshll.u32 [#allocation2], 4
      %s35 = int_to_ptr.vmem [resolvable:$true] %s34
      %40 = dma.hbm_to_vmem [thread:$0]  %s6, 256, %s35, [#allocation3], 64, 64, 4
    $region29: #{tpu_custom_call.1} parent=1 // pred_fallthru
      _
    // Predicated region
    $region30: #{tpu_custom_call.1} parent=1 // pred_check
      _
    $region31: #{tpu_custom_call.1} parent=1 // pred_check_branch
      %42 = sbr.rel (0) target = $region33
    $region32: #{tpu_custom_call.1} parent=1 // pred_region
      _
    $region33: #{tpu_custom_call.1} parent=1 // pred_fallthru
      _
    // Predicated region
    $region34: #{tpu_custom_call.1} parent=1 // pred_check
      _
    $region35: #{tpu_custom_call.1} parent=1 // pred_check_branch
      %44 = sbr.rel (0) target = $region37
    $region36: #{tpu_custom_call.1} parent=1 // pred_region
      _
    $region37: #{tpu_custom_call.1} parent=1 // pred_fallthru
      _
    // Predicated region
    $region38: #{tpu_custom_call.1} parent=1 // pred_check
      _
    $region39: #{tpu_custom_call.1} parent=1 // pred_check_branch
      %46 = sbr.rel (0) target = $region41
    $region40: #{tpu_custom_call.1} parent=1 // pred_region
      _
    $region41: #{tpu_custom_call.1} parent=1 // pred_fallthru
      _
    // Predicated region
    $region42: #{tpu_custom_call.1} parent=1 // pred_check
      _
    $region43: #{tpu_custom_call.1} parent=1 // pred_check_branch
      %48 = sbr.rel (0) target = $region45
    $region44: #{tpu_custom_call.1} parent=1 // pred_region
      %49 = dma.done [#allocation3], 256
    $region45: #{tpu_custom_call.1} parent=1 // pred_fallthru
      _
    %v51 = vld [vmem:[%s0] sm:$0xf]
    %v52 = vld [vmem:[%s2] sm:$0xf]
    %v53 = vld [vmem:[%s2 + $0x4] sm:$0xf]
    %v54 = vld [vmem:[%s2 + $0x8] sm:$0xf]
    %v55 = vld [vmem:[%s2 + $0xc] sm:$0xf]
    %v56 = vld [vmem:[%s3] sm:$0x1]
    %v58 = vlaneseq
    %v59 = vshrl.u32 %v58, 7
    %v60 = vsub.s32 0, %v59
    %v61 = vrot.slane %v56, %v60
    %v67 = vunpack.c.l.b16 %v52
    %v68 = vunpack.c.l.b16 %v53
    %v69 = vunpack.c.l.b16 %v54
    %v70 = vunpack.c.l.b16 %v55
    %v71 = vpack.c.b16 %v68, %v67
    %v72 = vpack.c.b16 %v70, %v69
    %vm75 = vcmask 261120
    %v77 = vsel %vm75, %v51, 0
    %79 = vmatprep.subr.bf16.mxu0 0
    %80 = vmatpush1.bf16.msra.mxu0 %v71
    %81 = vmatprep.subr.bf16.mxu0 0
    %82 = vmatpush1.bf16.msra.mxu0 %v72
    %83 = vmatprep.subr.bf16.mxu0 0
    %84 = vmatpush1.bf16.msra.mxu0 0
    %85 = vmatprep.subr.bf16.mxu0 0
    %86 = vmatpush1.bf16.msra.mxu0 0
    %87 = vmatprep.subr.bf16.mxu0 0
    %88 = vmatpush1.bf16.msra.mxu0 0
    %89 = vmatprep.subr.bf16.mxu0 0
    %90 = vmatpush1.bf16.msra.mxu0 0
    %91 = vmatprep.subr.bf16.mxu0 0
    %92 = vmatpush1.bf16.msra.mxu0 0
    %93 = vmatprep.subr.bf16.mxu0 0
    %94 = vmatpush1.bf16.msra.mxu0 0
    %95 = vmatprep.subr.bf16.mxu0 0
    %96 = vmatpush1.bf16.msra.mxu0 0
    %97 = vmatprep.subr.bf16.mxu0 0
    %98 = vmatpush1.bf16.msra.mxu0 0
    %99 = vmatprep.subr.bf16.mxu0 0
    %100 = vmatpush1.bf16.msra.mxu0 0
    %101 = vmatprep.subr.bf16.mxu0 0
    %102 = vmatpush1.bf16.msra.mxu0 0
    %103 = vmatprep.subr.bf16.mxu0 0
    %104 = vmatpush1.bf16.msra.mxu0 0
    %105 = vmatprep.subr.bf16.mxu0 0
    %106 = vmatpush1.bf16.msra.mxu0 0
    %107 = vmatprep.subr.bf16.mxu0 0
    %108 = vmatpush1.bf16.msra.mxu0 0
    %109 = vmatprep.subr.bf16.mxu0 0
    %110 = vmatpush1.bf16.msra.mxu0 0
    %111 = vmatprep.mubr.bf16.mxu0 0
    %112 = vmatmul.mubr.bf16.gmra.mrb[0].mxu0 %v77
    %v113 = vpop.f32.mrb[0].mxu0
    %v114 = vadd.f32 %v61, %v113
    %v115 = vpop.f32.mrb[0].mxu0
    %v116 = vpop.f32.mrb[0].mxu0
    %v117 = vpop.f32.mrb[0].mxu0
    %118 = vdwg.mxu0
    %v119 = vmax.f32 %v114, 0.0
    %v120 = vld [vmem:[%s1] sm:$0xf]
    %v121 = vld [vmem:[%s4] sm:$0xf]
    %v122 = vld [vmem:[%s4 + $0x4] sm:$0xf]
    %v123 = vld [vmem:[%s4 + $0x8] sm:$0xf]
    %v124 = vld [vmem:[%s4 + $0xc] sm:$0xf]
    %v125 = vld [vmem:[%s4 + $0x10] sm:$0xf]
    %v126 = vld [vmem:[%s4 + $0x14] sm:$0xf]
    %v127 = vld [vmem:[%s5] sm:$0x1]
    %v129 = vlaneseq
    %v130 = vshrl.u32 %v129, 7
    %v131 = vsub.s32 0, %v130
    %v132 = vrot.slane %v127, %v131
    %v140 = vunpack.c.l.b16 %v121
    %v141 = vunpack.c.l.b16 %v122
    %v142 = vunpack.c.l.b16 %v123
    %v143 = vunpack.c.l.b16 %v124
    %v144 = vunpack.c.l.b16 %v125
    %v145 = vunpack.c.l.b16 %v126
    %v146 = vpack.c.b16 %v141, %v140
    %v147 = vpack.c.b16 %v143, %v142
    %v148 = vpack.c.b16 %v145, %v144
    %vm152 = vcmask 392192
    %v154 = vsel %vm152, %v120, 0
    %156 = vmatprep.subr.bf16.mxu0 0
    %157 = vmatpush1.bf16.msra.mxu0 %v146
    %158 = vmatprep.subr.bf16.mxu0 0
    %159 = vmatpush1.bf16.msra.mxu0 %v147
    %160 = vmatprep.subr.bf16.mxu0 0
    %161 = vmatpush1.bf16.msra.mxu0 %v148
    %162 = vmatprep.subr.bf16.mxu0 0
    %163 = vmatpush1.bf16.msra.mxu0 0
    %164 = vmatprep.subr.bf16.mxu0 0
    %165 = vmatpush1.bf16.msra.mxu0 0
    %166 = vmatprep.subr.bf16.mxu0 0
    %167 = vmatpush1.bf16.msra.mxu0 0
    %168 = vmatprep.subr.bf16.mxu0 0
    %169 = vmatpush1.bf16.msra.mxu0 0
    %170 = vmatprep.subr.bf16.mxu0 0
    %171 = vmatpush1.bf16.msra.mxu0 0
    %172 = vmatprep.subr.bf16.mxu0 0
    %173 = vmatpush1.bf16.msra.mxu0 0
    %174 = vmatprep.subr.bf16.mxu0 0
    %175 = vmatpush1.bf16.msra.mxu0 0
    %176 = vmatprep.subr.bf16.mxu0 0
    %177 = vmatpush1.bf16.msra.mxu0 0
    %178 = vmatprep.subr.bf16.mxu0 0
    %179 = vmatpush1.bf16.msra.mxu0 0
    %180 = vmatprep.subr.bf16.mxu0 0
    %181 = vmatpush1.bf16.msra.mxu0 0
    %182 = vmatprep.subr.bf16.mxu0 0
    %183 = vmatpush1.bf16.msra.mxu0 0
    %184 = vmatprep.subr.bf16.mxu0 0
    %185 = vmatpush1.bf16.msra.mxu0 0
    %186 = vmatprep.subr.bf16.mxu0 0
    %187 = vmatpush1.bf16.msra.mxu0 0
    %188 = vmatprep.mubr.bf16.mxu0 0
    %189 = vmatmul.mubr.bf16.gmra.mrb[0].mxu0 %v154
    %v190 = vpop.f32.mrb[0].mxu0
    %v191 = vadd.f32 %v132, %v190
    %v192 = vpop.f32.mrb[0].mxu0
    %v193 = vpop.f32.mrb[0].mxu0
    %v194 = vpop.f32.mrb[0].mxu0
    %195 = vdwg.mxu0
    %v196 = vmax.f32 %v191, 0.0
    %v197 = vmul.f32 %v119, %v196
    %v198 = vpack.c.bf16 %v197, %v197
    %v199 = vld [vmem:[#allocation2] sm:$0xf]
    %v200 = vld [vmem:[#allocation2 + $0x4] sm:$0xf]
    %v201 = vld [vmem:[#allocation2 + $0x8] sm:$0xf]
    %v202 = vld [vmem:[#allocation2 + $0xc] sm:$0xf]
    %v203 = vld [vmem:[%s7] sm:$0x1]
    %v205 = vlaneseq
    %v206 = vshrl.u32 %v205, 7
    %v207 = vsub.s32 0, %v206
    %v208 = vrot.slane %v203, %v207
    %v214 = vunpack.c.l.b16 %v199
    %v215 = vunpack.c.l.b16 %v200
    %v216 = vunpack.c.l.b16 %v201
    %v217 = vunpack.c.l.b16 %v202
    %v218 = vpack.c.b16 %v215, %v214
    %v219 = vpack.c.b16 %v217, %v216
    %v223 = vsel %vm75, %v198, 0
    %225 = vmatprep.subr.bf16.mxu0 0
    %226 = vmatpush1.bf16.msra.mxu0 %v218
    %227 = vmatprep.subr.bf16.mxu0 0
    %228 = vmatpush1.bf16.msra.mxu0 %v219
    %229 = vmatprep.subr.bf16.mxu0 0
    %230 = vmatpush1.bf16.msra.mxu0 0
    %231 = vmatprep.subr.bf16.mxu0 0
    %232 = vmatpush1.bf16.msra.mxu0 0
    %233 = vmatprep.subr.bf16.mxu0 0
    %234 = vmatpush1.bf16.msra.mxu0 0
    %235 = vmatprep.subr.bf16.mxu0 0
    %236 = vmatpush1.bf16.msra.mxu0 0
    %237 = vmatprep.subr.bf16.mxu0 0
    %238 = vmatpush1.bf16.msra.mxu0 0
    %239 = vmatprep.subr.bf16.mxu0 0
    %240 = vmatpush1.bf16.msra.mxu0 0
    %241 = vmatprep.subr.bf16.mxu0 0
    %242 = vmatpush1.bf16.msra.mxu0 0
    %243 = vmatprep.subr.bf16.mxu0 0
    %244 = vmatpush1.bf16.msra.mxu0 0
    %245 = vmatprep.subr.bf16.mxu0 0
    %246 = vmatpush1.bf16.msra.mxu0 0
    %247 = vmatprep.subr.bf16.mxu0 0
    %248 = vmatpush1.bf16.msra.mxu0 0
    %249 = vmatprep.subr.bf16.mxu0 0
    %250 = vmatpush1.bf16.msra.mxu0 0
    %251 = vmatprep.subr.bf16.mxu0 0
    %252 = vmatpush1.bf16.msra.mxu0 0
    %253 = vmatprep.subr.bf16.mxu0 0
    %254 = vmatpush1.bf16.msra.mxu0 0
    %255 = vmatprep.subr.bf16.mxu0 0
    %256 = vmatpush1.bf16.msra.mxu0 0
    %257 = vmatprep.mubr.bf16.mxu0 0
    %258 = vmatmul.mubr.bf16.gmra.mrb[0].mxu0 %v223
    %v259 = vpop.f32.mrb[0].mxu0
    %v260 = vadd.f32 %v208, %v259
    %v261 = vpop.f32.mrb[0].mxu0
    %v262 = vpop.f32.mrb[0].mxu0
    %v263 = vpop.f32.mrb[0].mxu0
    %264 = vdwg.mxu0
    %v265 = vmax.f32 %v260, 0.0
    %v266 = vpack.c.bf16 %v265, %v265
    %v267 = vld [vmem:[%s8] sm:$0xf]
    %v268 = vld [vmem:[%s8 + $0x4] sm:$0xf]
    %v269 = vld [vmem:[%s8 + $0x8] sm:$0xf]
    %v270 = vld [vmem:[%s8 + $0xc] sm:$0xf]
    %v271 = vld [vmem:[%s8 + $0x10] sm:$0xf]
    %v272 = vld [vmem:[%s8 + $0x14] sm:$0xf]
    %v273 = vld [vmem:[%s8 + $0x18] sm:$0xf]
    %v274 = vld [vmem:[%s8 + $0x1c] sm:$0xf]
    %v275 = vld [vmem:[%s9] sm:$0x1]
    %v277 = vlaneseq
    %v278 = vshrl.u32 %v277, 7
    %v279 = vsub.s32 0, %v278
    %v280 = vrot.slane %v275, %v279
    %v290 = vunpack.c.l.b16 %v267
    %v291 = vunpack.c.l.b16 %v268
    %v292 = vunpack.c.l.b16 %v269
    %v293 = vunpack.c.l.b16 %v270
    %v294 = vunpack.c.l.b16 %v271
    %v295 = vunpack.c.l.b16 %v272
    %v296 = vunpack.c.l.b16 %v273
    %v297 = vunpack.c.l.b16 %v274
    %v298 = vpack.c.b16 %v291, %v290
    %v299 = vpack.c.b16 %v293, %v292
    %v300 = vpack.c.b16 %v295, %v294
    %v301 = vpack.c.b16 %v297, %v296
    %vm306 = vcmask 523264
    %v308 = vsel %vm306, %v266, 0
    %310 = vmatprep.subr.bf16.mxu0 0
    %311 = vmatpush1.bf16.msra.mxu0 %v298
    %312 = vmatprep.subr.bf16.mxu0 0
    %313 = vmatpush1.bf16.msra.mxu0 %v299
    %314 = vmatprep.subr.bf16.mxu0 0
    %315 = vmatpush1.bf16.msra.mxu0 %v300
    %316 = vmatprep.subr.bf16.mxu0 0
    %317 = vmatpush1.bf16.msra.mxu0 %v301
    %318 = vmatprep.subr.bf16.mxu0 0
    %319 = vmatpush1.bf16.msra.mxu0 0
    %320 = vmatprep.subr.bf16.mxu0 0
    %321 = vmatpush1.bf16.msra.mxu0 0
    %322 = vmatprep.subr.bf16.mxu0 0
    %323 = vmatpush1.bf16.msra.mxu0 0
    %324 = vmatprep.subr.bf16.mxu0 0
    %325 = vmatpush1.bf16.msra.mxu0 0
    %326 = vmatprep.subr.bf16.mxu0 0
    %327 = vmatpush1.bf16.msra.mxu0 0
    %328 = vmatprep.subr.bf16.mxu0 0
    %329 = vmatpush1.bf16.msra.mxu0 0
    %330 = vmatprep.subr.bf16.mxu0 0
    %331 = vmatpush1.bf16.msra.mxu0 0
    %332 = vmatprep.subr.bf16.mxu0 0
    %333 = vmatpush1.bf16.msra.mxu0 0
    %334 = vmatprep.subr.bf16.mxu0 0
    %335 = vmatpush1.bf16.msra.mxu0 0
    %336 = vmatprep.subr.bf16.mxu0 0
    %337 = vmatpush1.bf16.msra.mxu0 0
    %338 = vmatprep.subr.bf16.mxu0 0
    %339 = vmatpush1.bf16.msra.mxu0 0
    %340 = vmatprep.subr.bf16.mxu0 0
    %341 = vmatpush1.bf16.msra.mxu0 0
    %342 = vmatprep.mubr.bf16.mxu0 0
    %343 = vmatmul.mubr.bf16.gmra.mrb[0].mxu0 %v308
    %v344 = vpop.f32.mrb[0].mxu0
    %v345 = vadd.f32 %v280, %v344
    %v346 = vpop.f32.mrb[0].mxu0
    %v347 = vpop.f32.mrb[0].mxu0
    %v348 = vpop.f32.mrb[0].mxu0
    %349 = vdwg.mxu0
    %v350 = vpack.c.bf16 %v345, %v345
    %351 = vst [vmem:[#allocation5] sm:$0xf] %v350
    // Predicated region
    $region46: #{tpu_custom_call.1} parent=1 // pred_check
      _
    $region47: #{tpu_custom_call.1} parent=1 // pred_check_branch
      %353 = sbr.rel (0) target = $region49
    $region48: #{tpu_custom_call.1} parent=1 // pred_region
      %s355 = ssub.s32 64, 64
      %356 = vsyncadd [#allocation4], %s355
      %s358 = sshll.u32 [#allocation5], 4
      %s359 = int_to_ptr.vmem [resolvable:$true] %s358
      %361 = dma.vmem_to_hbm [thread:$0]  %s359, 64, %s10, [#allocation4]
    $region49: #{tpu_custom_call.1} parent=1 // pred_fallthru
      _
    // Predicated region
    $region50: #{tpu_custom_call.1} parent=1 // pred_check
      _
    $region51: #{tpu_custom_call.1} parent=1 // pred_check_branch
      %363 = sbr.rel (0) target = $region53
    $region52: #{tpu_custom_call.1} parent=1 // pred_region
      %364 = dma.done [#allocation4], 64
    $region53: #{tpu_custom_call.1} parent=1 // pred_fallthru
      _
    %365 = vsyncpa [#allocation3], 1
    %366 = vsyncpa [#allocation4], 1

// kernel: tpu_custom_call.1
$region0: #{tpu_custom_call.1}
  #allocation0 [shape = 'u32[]', space=smem, size = 0x4, offset = 0x4, fixed_abs, tag = 'smem constant byte address 0x4 - core index']
  #allocation1 [shape = 'u32[144,128]{1,0:T(1,128)}', space=vmem, size = 0x12000, scoped, tag = 'internal scratch']
  %s0 = inlined_call_operand.vmem [shape: bf16[8,32], index: 0, kind: input, shape index: {}]
  %s1 = inlined_call_operand.vmem [shape: bf16[8,48], index: 1, kind: input, shape index: {}]
  %s2 = inlined_call_operand.vmem [shape: bf16[32,32], index: 2, kind: input, shape index: {}]
  %s3 = inlined_call_operand.vmem [shape: f32[1,32], index: 3, kind: input, shape index: {}]
  %s4 = inlined_call_operand.vmem [shape: bf16[48,32], index: 4, kind: input, shape index: {}]
  %s5 = inlined_call_operand.vmem [shape: f32[1,32], index: 5, kind: input, shape index: {}]
  %s6 = inlined_call_operand.hbm [shape: bf16[32,64], index: 6, kind: input, shape index: {}]
  %s7 = inlined_call_operand.vmem [shape: f32[1,64], index: 7, kind: input, shape index: {}]
  %s8 = inlined_call_operand.vmem [shape: bf16[64,128], index: 8, kind: input, shape index: {}]
  %s9 = inlined_call_operand.vmem [shape: f32[1,128], index: 9, kind: input, shape index: {}]
  %s10 = inlined_call_operand.hbm [shape: bf16[8,128], index: 10, kind: output, shape index: {}]
  %s11 = sld [smem:[#allocation0]]
  $region54: #{tpu_custom_call.1} parent=0
    _
  %s13 = ssub.s32 1, %s11
  %s14 = scalar_select 0, %s13, %s11
  $region1: #{tpu_custom_call.1} parent=0
    #allocation2 [shape = 'u8[8192]{0}', space=vmem, size = 0x2000, scoped, tag = 'input window, operand 6, single buffered']
    #allocation3 [shape = 's32[1]{0}', space=sflag, size = 0x4, scoped, tag = 'scoped memory for tpu_custom_call.1']
    #allocation4 [shape = 's32[1]{0}', space=sflag, size = 0x4, scoped, tag = 'scoped memory for tpu_custom_call.1']
    #allocation5 [shape = 'u8[2048]{0}', space=vmem, size = 0x800, scoped, tag = 'output window, operand 0, single buffered']
    %15 = vsyncpa [#allocation3], 0
    %16 = vsyncpa [#allocation4], 0
    // Predicated region
    $region2: #{tpu_custom_call.1} parent=1 // pred_check
      _
    $region3: #{tpu_custom_call.1} parent=1 // pred_check_branch
      %18 = sbr.rel (0) target = $region5
    $region4: #{tpu_custom_call.1} parent=1 // pred_region
      _
    $region5: #{tpu_custom_call.1} parent=1 // pred_fallthru
      _
    // Predicated region
    $region6: #{tpu_custom_call.1} parent=1 // pred_check
      _
    $region7: #{tpu_custom_call.1} parent=1 // pred_check_branch
      %20 = sbr.rel (0) target = $region9
    $region8: #{tpu_custom_call.1} parent=1 // pred_region
      _
    $region9: #{tpu_custom_call.1} parent=1 // pred_fallthru
      _
    // Predicated region
    $region10: #{tpu_custom_call.1} parent=1 // pred_check
      _
    $region11: #{tpu_custom_call.1} parent=1 // pred_check_branch
      %22 = sbr.rel (0) target = $region13
    $region12: #{tpu_custom_call.1} parent=1 // pred_region
      _
    $region13: #{tpu_custom_call.1} parent=1 // pred_fallthru
      _
    // Predicated region
    $region14: #{tpu_custom_call.1} parent=1 // pred_check
      _
    $region15: #{tpu_custom_call.1} parent=1 // pred_check_branch
      %24 = sbr.rel (0) target = $region17
    $region16: #{tpu_custom_call.1} parent=1 // pred_region
      _
    $region17: #{tpu_custom_call.1} parent=1 // pred_fallthru
      _
    // Predicated region
    $region18: #{tpu_custom_call.1} parent=1 // pred_check
      _
    $region19: #{tpu_custom_call.1} parent=1 // pred_check_branch
      %26 = sbr.rel (0) target = $region21
    $region20: #{tpu_custom_call.1} parent=1 // pred_region
      _
    $region21: #{tpu_custom_call.1} parent=1 // pred_fallthru
      _
    // Predicated region
    $region22: #{tpu_custom_call.1} parent=1 // pred_check
      _
    $region23: #{tpu_custom_call.1} parent=1 // pred_check_branch
      %28 = sbr.rel (0) target = $region25
    $region24: #{tpu_custom_call.1} parent=1 // pred_region
      _
    $region25: #{tpu_custom_call.1} parent=1 // pred_fallthru
      _
    // Predicated region
    $region26: #{tpu_custom_call.1} parent=1 // pred_check
      _
    $region27: #{tpu_custom_call.1} parent=1 // pred_check_branch
      %30 = sbr.rel (0) target = $region29
    $region28: #{tpu_custom_call.1} parent=1 // pred_region
      %s32 = ssub.s32 256, 256
      %33 = vsyncadd [#allocation3], %s32
      %s34 = sshll.u32 [#allocation2], 4
      %s35 = int_to_ptr.vmem [resolvable:$true] %s34
      %40 = dma.hbm_to_vmem [thread:$0]  %s6, 256, %s35, [#allocation3], 64, 64, 4
    $region29: #{tpu_custom_call.1} parent=1 // pred_fallthru
      _
    // Predicated region
    $region30: #{tpu_custom_call.1} parent=1 // pred_check
      _
    $region31: #{tpu_custom_call.1} parent=1 // pred_check_branch
      %42 = sbr.rel (0) target = $region33
    $region32: #{tpu_custom_call.1} parent=1 // pred_region
      _
    $region33: #{tpu_custom_call.1} parent=1 // pred_fallthru
      _
    // Predicated region
    $region34: #{tpu_custom_call.1} parent=1 // pred_check
      _
    $region35: #{tpu_custom_call.1} parent=1 // pred_check_branch
      %44 = sbr.rel (0) target = $region37
    $region36: #{tpu_custom_call.1} parent=1 // pred_region
      _
    $region37: #{tpu_custom_call.1} parent=1 // pred_fallthru
      _
    // Predicated region
    $region38: #{tpu_custom_call.1} parent=1 // pred_check
      _
    $region39: #{tpu_custom_call.1} parent=1 // pred_check_branch
      %46 = sbr.rel (0) target = $region41
    $region40: #{tpu_custom_call.1} parent=1 // pred_region
      _
    $region41: #{tpu_custom_call.1} parent=1 // pred_fallthru
      _
    // Predicated region
    $region42: #{tpu_custom_call.1} parent=1 // pred_check
      _
    $region43: #{tpu_custom_call.1} parent=1 // pred_check_branch
      %48 = sbr.rel (0) target = $region45
    $region44: #{tpu_custom_call.1} parent=1 // pred_region
      %49 = dma.done [#allocation3], 256
    $region45: #{tpu_custom_call.1} parent=1 // pred_fallthru
      _
    %v51 = vld [vmem:[%s0] sm:$0xf]
    %v52 = vld [vmem:[%s2] sm:$0xf]
    %v53 = vld [vmem:[%s2 + $0x4] sm:$0xf]
    %v54 = vld [vmem:[%s2 + $0x8] sm:$0xf]
    %v55 = vld [vmem:[%s2 + $0xc] sm:$0xf]
    %v56 = vld [vmem:[%s3] sm:$0x1]
    %v58 = vlaneseq
    %v59 = vshrl.u32 %v58, 7
    %v60 = vsub.s32 0, %v59
    %v61 = vrot.slane %v56, %v60
    %v67 = vunpack.c.l.b16 %v52
    %v68 = vunpack.c.l.b16 %v53
    %v69 = vunpack.c.l.b16 %v54
    %v70 = vunpack.c.l.b16 %v55
    %v71 = vpack.c.b16 %v68, %v67
    %v72 = vpack.c.b16 %v70, %v69
    %vm75 = vcmask 261120
    %v77 = vsel %vm75, %v51, 0
    %79 = vmatprep.subr.bf16.mxu0 0
    %80 = vmatpush1.bf16.msra.mxu0 %v71
    %81 = vmatprep.subr.bf16.mxu0 0
    %82 = vmatpush1.bf16.msra.mxu0 %v72
    %83 = vmatprep.subr.bf16.mxu0 0
    %84 = vmatpush1.bf16.msra.mxu0 0
    %85 = vmatprep.subr.bf16.mxu0 0
    %86 = vmatpush1.bf16.msra.mxu0 0
    %87 = vmatprep.subr.bf16.mxu0 0
    %88 = vmatpush1.bf16.msra.mxu0 0
    %89 = vmatprep.subr.bf16.mxu0 0
    %90 = vmatpush1.bf16.msra.mxu0 0
    %91 = vmatprep.subr.bf16.mxu0 0
    %92 = vmatpush1.bf16.msra.mxu0 0
    %93 = vmatprep.subr.bf16.mxu0 0
    %94 = vmatpush1.bf16.msra.mxu0 0
    %95 = vmatprep.subr.bf16.mxu0 0
    %96 = vmatpush1.bf16.msra.mxu0 0
    %97 = vmatprep.subr.bf16.mxu0 0
    %98 = vmatpush1.bf16.msra.mxu0 0
    %99 = vmatprep.subr.bf16.mxu0 0
    %100 = vmatpush1.bf16.msra.mxu0 0
    %101 = vmatprep.subr.bf16.mxu0 0
    %102 = vmatpush1.bf16.msra.mxu0 0
    %103 = vmatprep.subr.bf16.mxu0 0
    %104 = vmatpush1.bf16.msra.mxu0 0
    %105 = vmatprep.subr.bf16.mxu0 0
    %106 = vmatpush1.bf16.msra.mxu0 0
    %107 = vmatprep.subr.bf16.mxu0 0
    %108 = vmatpush1.bf16.msra.mxu0 0
    %109 = vmatprep.subr.bf16.mxu0 0
    %110 = vmatpush1.bf16.msra.mxu0 0
    %111 = vmatprep.mubr.bf16.mxu0 0
    %112 = vmatmul.mubr.bf16.gmra.mrb[0].mxu0 %v77
    %v113 = vpop.f32.mrb[0].mxu0
    %v114 = vadd.f32 %v61, %v113
    %v115 = vpop.f32.mrb[0].mxu0
    %v116 = vpop.f32.mrb[0].mxu0
    %v117 = vpop.f32.mrb[0].mxu0
    %118 = vdwg.mxu0
    %v119 = vmax.f32 %v114, 0.0
    %v120 = vld [vmem:[%s1] sm:$0xf]
    %v121 = vld [vmem:[%s4] sm:$0xf]
    %v122 = vld [vmem:[%s4 + $0x4] sm:$0xf]
    %v123 = vld [vmem:[%s4 + $0x8] sm:$0xf]
    %v124 = vld [vmem:[%s4 + $0xc] sm:$0xf]
    %v125 = vld [vmem:[%s4 + $0x10] sm:$0xf]
    %v126 = vld [vmem:[%s4 + $0x14] sm:$0xf]
    %v127 = vld [vmem:[%s5] sm:$0x1]
    %v129 = vlaneseq
    %v130 = vshrl.u32 %v129, 7
    %v131 = vsub.s32 0, %v130
    %v132 = vrot.slane %v127, %v131
    %v140 = vunpack.c.l.b16 %v121
    %v141 = vunpack.c.l.b16 %v122
    %v142 = vunpack.c.l.b16 %v123
    %v143 = vunpack.c.l.b16 %v124
    %v144 = vunpack.c.l.b16 %v125
    %v145 = vunpack.c.l.b16 %v126
    %v146 = vpack.c.b16 %v141, %v140
    %v147 = vpack.c.b16 %v143, %v142
    %v148 = vpack.c.b16 %v145, %v144
    %vm152 = vcmask 392192
    %v154 = vsel %vm152, %v120, 0
    %156 = vmatprep.subr.bf16.mxu0 0
    %157 = vmatpush1.bf16.msra.mxu0 %v146
    %158 = vmatprep.subr.bf16.mxu0 0
    %159 = vmatpush1.bf16.msra.mxu0 %v147
    %160 = vmatprep.subr.bf16.mxu0 0
    %161 = vmatpush1.bf16.msra.mxu0 %v148
    %162 = vmatprep.subr.bf16.mxu0 0
    %163 = vmatpush1.bf16.msra.mxu0 0
    %164 = vmatprep.subr.bf16.mxu0 0
    %165 = vmatpush1.bf16.msra.mxu0 0
    %166 = vmatprep.subr.bf16.mxu0 0
    %167 = vmatpush1.bf16.msra.mxu0 0
    %168 = vmatprep.subr.bf16.mxu0 0
    %169 = vmatpush1.bf16.msra.mxu0 0
    %170 = vmatprep.subr.bf16.mxu0 0
    %171 = vmatpush1.bf16.msra.mxu0 0
    %172 = vmatprep.subr.bf16.mxu0 0
    %173 = vmatpush1.bf16.msra.mxu0 0
    %174 = vmatprep.subr.bf16.mxu0 0
    %175 = vmatpush1.bf16.msra.mxu0 0
    %176 = vmatprep.subr.bf16.mxu0 0
    %177 = vmatpush1.bf16.msra.mxu0 0
    %178 = vmatprep.subr.bf16.mxu0 0
    %179 = vmatpush1.bf16.msra.mxu0 0
    %180 = vmatprep.subr.bf16.mxu0 0
    %181 = vmatpush1.bf16.msra.mxu0 0
    %182 = vmatprep.subr.bf16.mxu0 0
    %183 = vmatpush1.bf16.msra.mxu0 0
    %184 = vmatprep.subr.bf16.mxu0 0
    %185 = vmatpush1.bf16.msra.mxu0 0
    %186 = vmatprep.subr.bf16.mxu0 0
    %187 = vmatpush1.bf16.msra.mxu0 0
    %188 = vmatprep.mubr.bf16.mxu0 0
    %189 = vmatmul.mubr.bf16.gmra.mrb[0].mxu0 %v154
    %v190 = vpop.f32.mrb[0].mxu0
    %v191 = vadd.f32 %v132, %v190
    %v192 = vpop.f32.mrb[0].mxu0
    %v193 = vpop.f32.mrb[0].mxu0
    %v194 = vpop.f32.mrb[0].mxu0
    %195 = vdwg.mxu0
    %v196 = vmax.f32 %v191, 0.0
    %v197 = vmul.f32 %v119, %v196
    %v198 = vpack.c.bf16 %v197, %v197
    %v199 = vld [vmem:[#allocation2] sm:$0xf]
    %v200 = vld [vmem:[#allocation2 + $0x4] sm:$0xf]
    %v201 = vld [vmem:[#allocation2 + $0x8] sm:$0xf]
    %v202 = vld [vmem:[#allocation2 + $0xc] sm:$0xf]
    %v203 = vld [vmem:[%s7] sm:$0x1]
    %v205 = vlaneseq
    %v206 = vshrl.u32 %v205, 7
    %v207 = vsub.s32 0, %v206
    %v208 = vrot.slane %v203, %v207
    %v214 = vunpack.c.l.b16 %v199
    %v215 = vunpack.c.l.b16 %v200
    %v216 = vunpack.c.l.b16 %v201
    %v217 = vunpack.c.l.b16 %v202
    %v218 = vpack.c.b16 %v215, %v214
    %v219 = vpack.c.b16 %v217, %v216
    %v223 = vsel %vm75, %v198, 0
    %225 = vmatprep.subr.bf16.mxu0 0
    %226 = vmatpush1.bf16.msra.mxu0 %v218
    %227 = vmatprep.subr.bf16.mxu0 0
    %228 = vmatpush1.bf16.msra.mxu0 %v219
    %229 = vmatprep.subr.bf16.mxu0 0
    %230 = vmatpush1.bf16.msra.mxu0 0
    %231 = vmatprep.subr.bf16.mxu0 0
    %232 = vmatpush1.bf16.msra.mxu0 0
    %233 = vmatprep.subr.bf16.mxu0 0
    %234 = vmatpush1.bf16.msra.mxu0 0
    %235 = vmatprep.subr.bf16.mxu0 0
    %236 = vmatpush1.bf16.msra.mxu0 0
    %237 = vmatprep.subr.bf16.mxu0 0
    %238 = vmatpush1.bf16.msra.mxu0 0
    %239 = vmatprep.subr.bf16.mxu0 0
    %240 = vmatpush1.bf16.msra.mxu0 0
    %241 = vmatprep.subr.bf16.mxu0 0
    %242 = vmatpush1.bf16.msra.mxu0 0
    %243 = vmatprep.subr.bf16.mxu0 0
    %244 = vmatpush1.bf16.msra.mxu0 0
    %245 = vmatprep.subr.bf16.mxu0 0
    %246 = vmatpush1.bf16.msra.mxu0 0
    %247 = vmatprep.subr.bf16.mxu0 0
    %248 = vmatpush1.bf16.msra.mxu0 0
    %249 = vmatprep.subr.bf16.mxu0 0
    %250 = vmatpush1.bf16.msra.mxu0 0
    %251 = vmatprep.subr.bf16.mxu0 0
    %252 = vmatpush1.bf16.msra.mxu0 0
    %253 = vmatprep.subr.bf16.mxu0 0
    %254 = vmatpush1.bf16.msra.mxu0 0
    %255 = vmatprep.subr.bf16.mxu0 0
    %256 = vmatpush1.bf16.msra.mxu0 0
    %257 = vmatprep.mubr.bf16.mxu0 0
    %258 = vmatmul.mubr.bf16.gmra.mrb[0].mxu0 %v223
    %v259 = vpop.f32.mrb[0].mxu0
    %v260 = vadd.f32 %v208, %v259
    %v261 = vpop.f32.mrb[0].mxu0
    %v262 = vpop.f32.mrb[0].mxu0
    %v263 = vpop.f32.mrb[0].mxu0
    %264 = vdwg.mxu0
    %v265 = vmax.f32 %v260, 0.0
    %v266 = vpack.c.bf16 %v265, %v265
    %v267 = vld [vmem:[%s8] sm:$0xf]
    %v268 = vld [vmem:[%s8 + $0x4] sm:$0xf]
    %v269 = vld [vmem:[%s8 + $0x8] sm:$0xf]
    %v270 = vld [vmem:[%s8 + $0xc] sm:$0xf]
    %v271 = vld [vmem:[%s8 + $0x10] sm:$0xf]
    %v272 = vld [vmem:[%s8 + $0x14] sm:$0xf]
    %v273 = vld [vmem:[%s8 + $0x18] sm:$0xf]
    %v274 = vld [vmem:[%s8 + $0x1c] sm:$0xf]
    %v275 = vld [vmem:[%s9] sm:$0x1]
    %v277 = vlaneseq
    %v278 = vshrl.u32 %v277, 7
    %v279 = vsub.s32 0, %v278
    %v280 = vrot.slane %v275, %v279
    %v290 = vunpack.c.l.b16 %v267
    %v291 = vunpack.c.l.b16 %v268
    %v292 = vunpack.c.l.b16 %v269
    %v293 = vunpack.c.l.b16 %v270
    %v294 = vunpack.c.l.b16 %v271
    %v295 = vunpack.c.l.b16 %v272
    %v296 = vunpack.c.l.b16 %v273
    %v297 = vunpack.c.l.b16 %v274
    %v298 = vpack.c.b16 %v291, %v290
    %v299 = vpack.c.b16 %v293, %v292
    %v300 = vpack.c.b16 %v295, %v294
    %v301 = vpack.c.b16 %v297, %v296
    %vm306 = vcmask 523264
    %v308 = vsel %vm306, %v266, 0
    %310 = vmatprep.subr.bf16.mxu0 0
    %311 = vmatpush1.bf16.msra.mxu0 %v298
    %312 = vmatprep.subr.bf16.mxu0 0
    %313 = vmatpush1.bf16.msra.mxu0 %v299
    %314 = vmatprep.subr.bf16.mxu0 0
    %315 = vmatpush1.bf16.msra.mxu0 %v300
    %316 = vmatprep.subr.bf16.mxu0 0
    %317 = vmatpush1.bf16.msra.mxu0 %v301
    %318 = vmatprep.subr.bf16.mxu0 0
    %319 = vmatpush1.bf16.msra.mxu0 0
    %320 = vmatprep.subr.bf16.mxu0 0
    %321 = vmatpush1.bf16.msra.mxu0 0
    %322 = vmatprep.subr.bf16.mxu0 0
    %323 = vmatpush1.bf16.msra.mxu0 0
    %324 = vmatprep.subr.bf16.mxu0 0
    %325 = vmatpush1.bf16.msra.mxu0 0
    %326 = vmatprep.subr.bf16.mxu0 0
    %327 = vmatpush1.bf16.msra.mxu0 0
    %328 = vmatprep.subr.bf16.mxu0 0
    %329 = vmatpush1.bf16.msra.mxu0 0
    %330 = vmatprep.subr.bf16.mxu0 0
    %331 = vmatpush1.bf16.msra.mxu0 0
    %332 = vmatprep.subr.bf16.mxu0 0
    %333 = vmatpush1.bf16.msra.mxu0 0
    %334 = vmatprep.subr.bf16.mxu0 0
    %335 = vmatpush1.bf16.msra.mxu0 0
    %336 = vmatprep.subr.bf16.mxu0 0
    %337 = vmatpush1.bf16.msra.mxu0 0
    %338 = vmatprep.subr.bf16.mxu0 0
    %339 = vmatpush1.bf16.msra.mxu0 0
    %340 = vmatprep.subr.bf16.mxu0 0
    %341 = vmatpush1.bf16.msra.mxu0 0
    %342 = vmatprep.mubr.bf16.mxu0 0
    %343 = vmatmul.mubr.bf16.gmra.mrb[0].mxu0 %v308
    %v344 = vpop.f32.mrb[0].mxu0
    %v345 = vadd.f32 %v280, %v344
    %v346 = vpop.f32.mrb[0].mxu0
    %v347 = vpop.f32.mrb[0].mxu0
    %v348 = vpop.f32.mrb[0].mxu0
    %349 = vdwg.mxu0
    %v350 = vpack.c.bf16 %v345, %v345
    %351 = vst [vmem:[#allocation5] sm:$0xf] %v350
    // Predicated region
    $region46: #{tpu_custom_call.1} parent=1 // pred_check
      _
    $region47: #{tpu_custom_call.1} parent=1 // pred_check_branch
      %353 = sbr.rel (0) target = $region49
    $region48: #{tpu_custom_call.1} parent=1 // pred_region
      %s355 = ssub.s32 64, 64
      %356 = vsyncadd [#allocation4], %s355
      %s358 = sshll.u32 [#allocation5], 4
      %s359 = int_to_ptr.vmem [resolvable:$true] %s358
      %361 = dma.vmem_to_hbm [thread:$0]  %s359, 64, %s10, [#allocation4]
    $region49: #{tpu_custom_call.1} parent=1 // pred_fallthru
      _
    // Predicated region
    $region50: #{tpu_custom_call.1} parent=1 // pred_check
      _
    $region51: #{tpu_custom_call.1} parent=1 // pred_check_branch
      %363 = sbr.rel (0) target = $region53
    $region52: #{tpu_custom_call.1} parent=1 // pred_region
      %364 = dma.done [#allocation4], 64
    $region53: #{tpu_custom_call.1} parent=1 // pred_fallthru
      _
    %365 = vsyncpa [#allocation3], 1
    %366 = vsyncpa [#allocation4], 1

// kernel: tpu_custom_call.1
$region0: #{tpu_custom_call.1}
  #allocation0 [shape = 'u32[]', space=smem, size = 0x4, offset = 0x4, fixed_abs, tag = 'smem constant byte address 0x4 - core index']
  #allocation1 [shape = 'u32[144,128]{1,0:T(1,128)}', space=vmem, size = 0x12000, scoped, tag = 'internal scratch']
  #allocation2 [shape = 'bf16[8,64]{1,0:T(8,128)(2,1)}', space=vmem, size = 0x800, scoped, tag = 'scratch operand']
  %s0 = inlined_call_operand.vmem [shape: bf16[8,32], index: 0, kind: input, shape index: {}]
  %s1 = inlined_call_operand.vmem [shape: bf16[8,48], index: 1, kind: input, shape index: {}]
  %s2 = inlined_call_operand.vmem [shape: bf16[32,32], index: 2, kind: input, shape index: {}]
  %s3 = inlined_call_operand.vmem [shape: f32[1,32], index: 3, kind: input, shape index: {}]
  %s4 = inlined_call_operand.vmem [shape: bf16[48,32], index: 4, kind: input, shape index: {}]
  %s5 = inlined_call_operand.vmem [shape: f32[1,32], index: 5, kind: input, shape index: {}]
  %s6 = inlined_call_operand.hbm [shape: bf16[32,64], index: 6, kind: input, shape index: {}]
  %s7 = inlined_call_operand.vmem [shape: f32[1,64], index: 7, kind: input, shape index: {}]
  %s8 = inlined_call_operand.vmem [shape: bf16[64,128], index: 8, kind: input, shape index: {}]
  %s9 = inlined_call_operand.vmem [shape: f32[1,128], index: 9, kind: input, shape index: {}]
  %s10 = inlined_call_operand.hbm [shape: bf16[8,128], index: 10, kind: output, shape index: {}]
  %s11 = sld [smem:[#allocation0]]
  $region58: #{tpu_custom_call.1} parent=0
    _
  %s13 = ssub.s32 1, %s11
  %s14 = scalar_select 0, %s13, %s11
  $region1: #{tpu_custom_call.1} parent=0
    #allocation3 [shape = 'u8[8192]{0}', space=vmem, size = 0x2000, scoped, tag = 'input window, operand 6, single buffered']
    #allocation4 [shape = 's32[1]{0}', space=sflag, size = 0x4, scoped, tag = 'scoped memory for tpu_custom_call.1']
    #allocation5 [shape = 's32[1]{0}', space=sflag, size = 0x4, scoped, tag = 'scoped memory for tpu_custom_call.1']
    #allocation6 [shape = 'u8[2048]{0}', space=vmem, size = 0x800, scoped, tag = 'output window, operand 0, single buffered']
    %15 = vsyncpa [#allocation4], 0
    %16 = vsyncpa [#allocation5], 0
    // Predicated region
    $region2: #{tpu_custom_call.1} parent=1 // pred_check
      _
    $region3: #{tpu_custom_call.1} parent=1 // pred_check_branch
      %18 = sbr.rel (0) target = $region5
    $region4: #{tpu_custom_call.1} parent=1 // pred_region
      _
    $region5: #{tpu_custom_call.1} parent=1 // pred_fallthru
      _
    // Predicated region
    $region6: #{tpu_custom_call.1} parent=1 // pred_check
      _
    $region7: #{tpu_custom_call.1} parent=1 // pred_check_branch
      %20 = sbr.rel (0) target = $region9
    $region8: #{tpu_custom_call.1} parent=1 // pred_region
      _
    $region9: #{tpu_custom_call.1} parent=1 // pred_fallthru
      _
    // Predicated region
    $region10: #{tpu_custom_call.1} parent=1 // pred_check
      _
    $region11: #{tpu_custom_call.1} parent=1 // pred_check_branch
      %22 = sbr.rel (0) target = $region13
    $region12: #{tpu_custom_call.1} parent=1 // pred_region
      _
    $region13: #{tpu_custom_call.1} parent=1 // pred_fallthru
      _
    // Predicated region
    $region14: #{tpu_custom_call.1} parent=1 // pred_check
      _
    $region15: #{tpu_custom_call.1} parent=1 // pred_check_branch
      %24 = sbr.rel (0) target = $region17
    $region16: #{tpu_custom_call.1} parent=1 // pred_region
      _
    $region17: #{tpu_custom_call.1} parent=1 // pred_fallthru
      _
    // Predicated region
    $region18: #{tpu_custom_call.1} parent=1 // pred_check
      _
    $region19: #{tpu_custom_call.1} parent=1 // pred_check_branch
      %26 = sbr.rel (0) target = $region21
    $region20: #{tpu_custom_call.1} parent=1 // pred_region
      _
    $region21: #{tpu_custom_call.1} parent=1 // pred_fallthru
      _
    // Predicated region
    $region22: #{tpu_custom_call.1} parent=1 // pred_check
      _
    $region23: #{tpu_custom_call.1} parent=1 // pred_check_branch
      %28 = sbr.rel (0) target = $region25
    $region24: #{tpu_custom_call.1} parent=1 // pred_region
      _
    $region25: #{tpu_custom_call.1} parent=1 // pred_fallthru
      _
    // Predicated region
    $region26: #{tpu_custom_call.1} parent=1 // pred_check
      _
    $region27: #{tpu_custom_call.1} parent=1 // pred_check_branch
      %30 = sbr.rel (0) target = $region29
    $region28: #{tpu_custom_call.1} parent=1 // pred_region
      %s32 = ssub.s32 256, 256
      %33 = vsyncadd [#allocation4], %s32
      %s34 = sshll.u32 [#allocation3], 4
      %s35 = int_to_ptr.vmem [resolvable:$true] %s34
      %40 = dma.hbm_to_vmem [thread:$0]  %s6, 256, %s35, [#allocation4], 64, 64, 4
    $region29: #{tpu_custom_call.1} parent=1 // pred_fallthru
      _
    // Predicated region
    $region30: #{tpu_custom_call.1} parent=1 // pred_check
      _
    $region31: #{tpu_custom_call.1} parent=1 // pred_check_branch
      %42 = sbr.rel (0) target = $region33
    $region32: #{tpu_custom_call.1} parent=1 // pred_region
      _
    $region33: #{tpu_custom_call.1} parent=1 // pred_fallthru
      _
    // Predicated region
    $region34: #{tpu_custom_call.1} parent=1 // pred_check
      _
    $region35: #{tpu_custom_call.1} parent=1 // pred_check_branch
      %44 = sbr.rel (0) target = $region37
    $region36: #{tpu_custom_call.1} parent=1 // pred_region
      _
    $region37: #{tpu_custom_call.1} parent=1 // pred_fallthru
      _
    // Predicated region
    $region38: #{tpu_custom_call.1} parent=1 // pred_check
      _
    $region39: #{tpu_custom_call.1} parent=1 // pred_check_branch
      %46 = sbr.rel (0) target = $region41
    $region40: #{tpu_custom_call.1} parent=1 // pred_region
      _
    $region41: #{tpu_custom_call.1} parent=1 // pred_fallthru
      _
    // Predicated region
    $region42: #{tpu_custom_call.1} parent=1 // pred_check
      _
    $region43: #{tpu_custom_call.1} parent=1 // pred_check_branch
      %48 = sbr.rel (0) target = $region45
    $region44: #{tpu_custom_call.1} parent=1 // pred_region
      %49 = dma.done [#allocation4], 256
    $region45: #{tpu_custom_call.1} parent=1 // pred_fallthru
      _
    %p51 = scmp.eq.s32.totalorder 0, 0
    // Predicated region
    $region46: #{tpu_custom_call.1} parent=1 // pred_check
      %p52 = pneg %p51
    $region47: #{tpu_custom_call.1} parent=1 // pred_check_branch
      %54 = sbr.rel (%p52) target = $region49
    $region48: #{tpu_custom_call.1} parent=1 // pred_region
      %v55 = vld [vmem:[%s0] sm:$0xf]
      %v56 = vld [vmem:[%s2] sm:$0xf]
      %v57 = vld [vmem:[%s2 + $0x4] sm:$0xf]
      %v58 = vld [vmem:[%s2 + $0x8] sm:$0xf]
      %v59 = vld [vmem:[%s2 + $0xc] sm:$0xf]
      %v60 = vld [vmem:[%s3] sm:$0x1]
      %v62 = vlaneseq
      %v63 = vshrl.u32 %v62, 7
      %v64 = vsub.s32 0, %v63
      %v65 = vrot.slane %v60, %v64
      %v71 = vunpack.c.l.b16 %v56
      %v72 = vunpack.c.l.b16 %v57
      %v73 = vunpack.c.l.b16 %v58
      %v74 = vunpack.c.l.b16 %v59
      %v75 = vpack.c.b16 %v72, %v71
      %v76 = vpack.c.b16 %v74, %v73
      %vm79 = vcmask 261120
      %v81 = vsel %vm79, %v55, 0
      %83 = vmatprep.subr.bf16.mxu0 0
      %84 = vmatpush1.bf16.msra.mxu0 %v75
      %85 = vmatprep.subr.bf16.mxu0 0
      %86 = vmatpush1.bf16.msra.mxu0 %v76
      %87 = vmatprep.subr.bf16.mxu0 0
      %88 = vmatpush1.bf16.msra.mxu0 0
      %89 = vmatprep.subr.bf16.mxu0 0
      %90 = vmatpush1.bf16.msra.mxu0 0
      %91 = vmatprep.subr.bf16.mxu0 0
      %92 = vmatpush1.bf16.msra.mxu0 0
      %93 = vmatprep.subr.bf16.mxu0 0
      %94 = vmatpush1.bf16.msra.mxu0 0
      %95 = vmatprep.subr.bf16.mxu0 0
      %96 = vmatpush1.bf16.msra.mxu0 0
      %97 = vmatprep.subr.bf16.mxu0 0
      %98 = vmatpush1.bf16.msra.mxu0 0
      %99 = vmatprep.subr.bf16.mxu0 0
      %100 = vmatpush1.bf16.msra.mxu0 0
      %101 = vmatprep.subr.bf16.mxu0 0
      %102 = vmatpush1.bf16.msra.mxu0 0
      %103 = vmatprep.subr.bf16.mxu0 0
      %104 = vmatpush1.bf16.msra.mxu0 0
      %105 = vmatprep.subr.bf16.mxu0 0
      %106 = vmatpush1.bf16.msra.mxu0 0
      %107 = vmatprep.subr.bf16.mxu0 0
      %108 = vmatpush1.bf16.msra.mxu0 0
      %109 = vmatprep.subr.bf16.mxu0 0
      %110 = vmatpush1.bf16.msra.mxu0 0
      %111 = vmatprep.subr.bf16.mxu0 0
      %112 = vmatpush1.bf16.msra.mxu0 0
      %113 = vmatprep.subr.bf16.mxu0 0
      %114 = vmatpush1.bf16.msra.mxu0 0
      %115 = vmatprep.mubr.bf16.mxu0 0
      %116 = vmatmul.mubr.bf16.gmra.mrb[0].mxu0 %v81
      %v117 = vpop.f32.mrb[0].mxu0
      %v118 = vadd.f32 %v65, %v117
      %v119 = vpop.f32.mrb[0].mxu0
      %v120 = vpop.f32.mrb[0].mxu0
      %v121 = vpop.f32.mrb[0].mxu0
      %122 = vdwg.mxu0
      %v123 = vmax.f32 %v118, 0.0
      %v124 = vld [vmem:[%s1] sm:$0xf]
      %v125 = vld [vmem:[%s4] sm:$0xf]
      %v126 = vld [vmem:[%s4 + $0x4] sm:$0xf]
      %v127 = vld [vmem:[%s4 + $0x8] sm:$0xf]
      %v128 = vld [vmem:[%s4 + $0xc] sm:$0xf]
      %v129 = vld [vmem:[%s4 + $0x10] sm:$0xf]
      %v130 = vld [vmem:[%s4 + $0x14] sm:$0xf]
      %v131 = vld [vmem:[%s5] sm:$0x1]
      %v133 = vlaneseq
      %v134 = vshrl.u32 %v133, 7
      %v135 = vsub.s32 0, %v134
      %v136 = vrot.slane %v131, %v135
      %v144 = vunpack.c.l.b16 %v125
      %v145 = vunpack.c.l.b16 %v126
      %v146 = vunpack.c.l.b16 %v127
      %v147 = vunpack.c.l.b16 %v128
      %v148 = vunpack.c.l.b16 %v129
      %v149 = vunpack.c.l.b16 %v130
      %v150 = vpack.c.b16 %v145, %v144
      %v151 = vpack.c.b16 %v147, %v146
      %v152 = vpack.c.b16 %v149, %v148
      %vm156 = vcmask 392192
      %v158 = vsel %vm156, %v124, 0
      %160 = vmatprep.subr.bf16.mxu0 0
      %161 = vmatpush1.bf16.msra.mxu0 %v150
      %162 = vmatprep.subr.bf16.mxu0 0
      %163 = vmatpush1.bf16.msra.mxu0 %v151
      %164 = vmatprep.subr.bf16.mxu0 0
      %165 = vmatpush1.bf16.msra.mxu0 %v152
      %166 = vmatprep.subr.bf16.mxu0 0
      %167 = vmatpush1.bf16.msra.mxu0 0
      %168 = vmatprep.subr.bf16.mxu0 0
      %169 = vmatpush1.bf16.msra.mxu0 0
      %170 = vmatprep.subr.bf16.mxu0 0
      %171 = vmatpush1.bf16.msra.mxu0 0
      %172 = vmatprep.subr.bf16.mxu0 0
      %173 = vmatpush1.bf16.msra.mxu0 0
      %174 = vmatprep.subr.bf16.mxu0 0
      %175 = vmatpush1.bf16.msra.mxu0 0
      %176 = vmatprep.subr.bf16.mxu0 0
      %177 = vmatpush1.bf16.msra.mxu0 0
      %178 = vmatprep.subr.bf16.mxu0 0
      %179 = vmatpush1.bf16.msra.mxu0 0
      %180 = vmatprep.subr.bf16.mxu0 0
      %181 = vmatpush1.bf16.msra.mxu0 0
      %182 = vmatprep.subr.bf16.mxu0 0
      %183 = vmatpush1.bf16.msra.mxu0 0
      %184 = vmatprep.subr.bf16.mxu0 0
      %185 = vmatpush1.bf16.msra.mxu0 0
      %186 = vmatprep.subr.bf16.mxu0 0
      %187 = vmatpush1.bf16.msra.mxu0 0
      %188 = vmatprep.subr.bf16.mxu0 0
      %189 = vmatpush1.bf16.msra.mxu0 0
      %190 = vmatprep.subr.bf16.mxu0 0
      %191 = vmatpush1.bf16.msra.mxu0 0
      %192 = vmatprep.mubr.bf16.mxu0 0
      %193 = vmatmul.mubr.bf16.gmra.mrb[0].mxu0 %v158
      %v194 = vpop.f32.mrb[0].mxu0
      %v195 = vadd.f32 %v136, %v194
      %v196 = vpop.f32.mrb[0].mxu0
      %v197 = vpop.f32.mrb[0].mxu0
      %v198 = vpop.f32.mrb[0].mxu0
      %199 = vdwg.mxu0
      %v200 = vmax.f32 %v195, 0.0
      %v201 = vmul.f32 %v123, %v200
      %v202 = vpack.c.bf16 %v201, %v201
      %v203 = vld [vmem:[#allocation3] sm:$0xf]
      %v204 = vld [vmem:[#allocation3 + $0x4] sm:$0xf]
      %v205 = vld [vmem:[#allocation3 + $0x8] sm:$0xf]
      %v206 = vld [vmem:[#allocation3 + $0xc] sm:$0xf]
      %v207 = vld [vmem:[%s7] sm:$0x1]
      %v209 = vlaneseq
      %v210 = vshrl.u32 %v209, 7
      %v211 = vsub.s32 0, %v210
      %v212 = vrot.slane %v207, %v211
      %v218 = vunpack.c.l.b16 %v203
      %v219 = vunpack.c.l.b16 %v204
      %v220 = vunpack.c.l.b16 %v205
      %v221 = vunpack.c.l.b16 %v206
      %v222 = vpack.c.b16 %v219, %v218
      %v223 = vpack.c.b16 %v221, %v220
      %v227 = vsel %vm79, %v202, 0
      %229 = vmatprep.subr.bf16.mxu0 0
      %230 = vmatpush1.bf16.msra.mxu0 %v222
      %231 = vmatprep.subr.bf16.mxu0 0
      %232 = vmatpush1.bf16.msra.mxu0 %v223
      %233 = vmatprep.subr.bf16.mxu0 0
      %234 = vmatpush1.bf16.msra.mxu0 0
      %235 = vmatprep.subr.bf16.mxu0 0
      %236 = vmatpush1.bf16.msra.mxu0 0
      %237 = vmatprep.subr.bf16.mxu0 0
      %238 = vmatpush1.bf16.msra.mxu0 0
      %239 = vmatprep.subr.bf16.mxu0 0
      %240 = vmatpush1.bf16.msra.mxu0 0
      %241 = vmatprep.subr.bf16.mxu0 0
      %242 = vmatpush1.bf16.msra.mxu0 0
      %243 = vmatprep.subr.bf16.mxu0 0
      %244 = vmatpush1.bf16.msra.mxu0 0
      %245 = vmatprep.subr.bf16.mxu0 0
      %246 = vmatpush1.bf16.msra.mxu0 0
      %247 = vmatprep.subr.bf16.mxu0 0
      %248 = vmatpush1.bf16.msra.mxu0 0
      %249 = vmatprep.subr.bf16.mxu0 0
      %250 = vmatpush1.bf16.msra.mxu0 0
      %251 = vmatprep.subr.bf16.mxu0 0
      %252 = vmatpush1.bf16.msra.mxu0 0
      %253 = vmatprep.subr.bf16.mxu0 0
      %254 = vmatpush1.bf16.msra.mxu0 0
      %255 = vmatprep.subr.bf16.mxu0 0
      %256 = vmatpush1.bf16.msra.mxu0 0
      %257 = vmatprep.subr.bf16.mxu0 0
      %258 = vmatpush1.bf16.msra.mxu0 0
      %259 = vmatprep.subr.bf16.mxu0 0
      %260 = vmatpush1.bf16.msra.mxu0 0
      %261 = vmatprep.mubr.bf16.mxu0 0
      %262 = vmatmul.mubr.bf16.gmra.mrb[0].mxu0 %v227
      %v263 = vpop.f32.mrb[0].mxu0
      %v264 = vadd.f32 %v212, %v263
      %v265 = vpop.f32.mrb[0].mxu0
      %v266 = vpop.f32.mrb[0].mxu0
      %v267 = vpop.f32.mrb[0].mxu0
      %268 = vdwg.mxu0
      %v269 = vmax.f32 %v264, 0.0
      %v270 = vpack.c.bf16 %v269, %v269
      %vm271 = vcmask 519168
      %272 = vst.msk [vmem:[#allocation2] sm:$0xf] %vm271, %v270
    $region49: #{tpu_custom_call.1} parent=1 // pred_fallthru
      _
    %v273 = vld [vmem:[#allocation2] sm:$0xf]
    %v274 = vld [vmem:[%s8] sm:$0xf]
    %v275 = vld [vmem:[%s8 + $0x4] sm:$0xf]
    %v276 = vld [vmem:[%s8 + $0x8] sm:$0xf]
    %v277 = vld [vmem:[%s8 + $0xc] sm:$0xf]
    %v278 = vld [vmem:[%s8 + $0x10] sm:$0xf]
    %v279 = vld [vmem:[%s8 + $0x14] sm:$0xf]
    %v280 = vld [vmem:[%s8 + $0x18] sm:$0xf]
    %v281 = vld [vmem:[%s8 + $0x1c] sm:$0xf]
    %v282 = vld [vmem:[%s9] sm:$0x1]
    %v284 = vlaneseq
    %v285 = vshrl.u32 %v284, 7
    %v286 = vsub.s32 0, %v285
    %v287 = vrot.slane %v282, %v286
    %v297 = vunpack.c.l.b16 %v274
    %v298 = vunpack.c.l.b16 %v275
    %v299 = vunpack.c.l.b16 %v276
    %v300 = vunpack.c.l.b16 %v277
    %v301 = vunpack.c.l.b16 %v278
    %v302 = vunpack.c.l.b16 %v279
    %v303 = vunpack.c.l.b16 %v280
    %v304 = vunpack.c.l.b16 %v281
    %v305 = vpack.c.b16 %v298, %v297
    %v306 = vpack.c.b16 %v300, %v299
    %v307 = vpack.c.b16 %v302, %v301
    %v308 = vpack.c.b16 %v304, %v303
    %vm313 = vcmask 523264
    %v315 = vsel %vm313, %v273, 0
    %317 = vmatprep.subr.bf16.mxu0 0
    %318 = vmatpush1.bf16.msra.mxu0 %v305
    %319 = vmatprep.subr.bf16.mxu0 0
    %320 = vmatpush1.bf16.msra.mxu0 %v306
    %321 = vmatprep.subr.bf16.mxu0 0
    %322 = vmatpush1.bf16.msra.mxu0 %v307
    %323 = vmatprep.subr.bf16.mxu0 0
    %324 = vmatpush1.bf16.msra.mxu0 %v308
    %325 = vmatprep.subr.bf16.mxu0 0
    %326 = vmatpush1.bf16.msra.mxu0 0
    %327 = vmatprep.subr.bf16.mxu0 0
    %328 = vmatpush1.bf16.msra.mxu0 0
    %329 = vmatprep.subr.bf16.mxu0 0
    %330 = vmatpush1.bf16.msra.mxu0 0
    %331 = vmatprep.subr.bf16.mxu0 0
    %332 = vmatpush1.bf16.msra.mxu0 0
    %333 = vmatprep.subr.bf16.mxu0 0
    %334 = vmatpush1.bf16.msra.mxu0 0
    %335 = vmatprep.subr.bf16.mxu0 0
    %336 = vmatpush1.bf16.msra.mxu0 0
    %337 = vmatprep.subr.bf16.mxu0 0
    %338 = vmatpush1.bf16.msra.mxu0 0
    %339 = vmatprep.subr.bf16.mxu0 0
    %340 = vmatpush1.bf16.msra.mxu0 0
    %341 = vmatprep.subr.bf16.mxu0 0
    %342 = vmatpush1.bf16.msra.mxu0 0
    %343 = vmatprep.subr.bf16.mxu0 0
    %344 = vmatpush1.bf16.msra.mxu0 0
    %345 = vmatprep.subr.bf16.mxu0 0
    %346 = vmatpush1.bf16.msra.mxu0 0
    %347 = vmatprep.subr.bf16.mxu0 0
    %348 = vmatpush1.bf16.msra.mxu0 0
    %349 = vmatprep.mubr.bf16.mxu0 0
    %350 = vmatmul.mubr.bf16.gmra.mrb[0].mxu0 %v315
    %v351 = vpop.f32.mrb[0].mxu0
    %v352 = vadd.f32 %v287, %v351
    %v353 = vpop.f32.mrb[0].mxu0
    %v354 = vpop.f32.mrb[0].mxu0
    %v355 = vpop.f32.mrb[0].mxu0
    %356 = vdwg.mxu0
    %v357 = vpack.c.bf16 %v352, %v352
    %358 = vst [vmem:[#allocation6] sm:$0xf] %v357
    // Predicated region
    $region50: #{tpu_custom_call.1} parent=1 // pred_check
      _
    $region51: #{tpu_custom_call.1} parent=1 // pred_check_branch
      %360 = sbr.rel (0) target = $region53
    $region52: #{tpu_custom_call.1} parent=1 // pred_region
      %s362 = ssub.s32 64, 64
      %363 = vsyncadd [#allocation5], %s362
      %s365 = sshll.u32 [#allocation6], 4
      %s366 = int_to_ptr.vmem [resolvable:$true] %s365
      %368 = dma.vmem_to_hbm [thread:$0]  %s366, 64, %s10, [#allocation5]
    $region53: #{tpu_custom_call.1} parent=1 // pred_fallthru
      _
    // Predicated region
    $region54: #{tpu_custom_call.1} parent=1 // pred_check
      _
    $region55: #{tpu_custom_call.1} parent=1 // pred_check_branch
      %370 = sbr.rel (0) target = $region57
    $region56: #{tpu_custom_call.1} parent=1 // pred_region
      %371 = dma.done [#allocation5], 64
    $region57: #{tpu_custom_call.1} parent=1 // pred_fallthru
      _
    %372 = vsyncpa [#allocation4], 1
    %373 = vsyncpa [#allocation5], 1

</llo_original>
